<compile_context>
chip_gen: v5e
topology: v5e:2x2
jax: 0.10.0
libtpu: 0.0.40
codegen_flags: <defaults>
</compile_context>

<pallas_src>
import numpy as np
import jax
import jax.numpy as jnp
from jax import lax
from jax.experimental import pallas as pl
from jax.experimental.pallas import tpu as pltpu


def _make_rem_kernel(bounds):
    """Build the REM kernel for Python-known head-group boundaries.

    bounds = (0, k1, k1+k4, k1+k4+k2, k1+k4+k2+k3, k1+k4+k2+k3+k5, H), i.e. the
    cumulative boundaries of the output-head groups
      [regular][dilated regular][cyclic cos][cyclic sin][dil cos][dil sin].
    """
    b0, b1, b2, b3, b4, b5, b6 = bounds
    H = b6

    def kernel(logabs_ref, sign_ref, theta_ref, dil_ref, rdil_ref, out_ref):
        tm, tn = out_ref.shape                    # (row tile, full T)
        h = pl.program_id(0)                      # output head index
        row0 = pl.program_id(1) * tm              # global row offset

        # per-head scalars (SMEM reads)
        log_abs = logabs_ref[h]     # log|base| (base = tanh(eta) or sigmoid(nu))
        sign_neg = sign_ref[h]      # 1.0 if base < 0 else 0.0
        th = theta_ref[h]           # theta
        dd = dil_ref[h]             # dilation factor as float (>= 1)
        rd = rdil_ref[h]            # 1 / dilation

        def indices():
            i = lax.broadcasted_iota(jnp.int32, (tm, tn), 0) + row0
            j = lax.broadcasted_iota(jnp.int32, (tm, tn), 1)
            return i, j

        def clamped_L(i, j):
            # masked Toeplitz distance: |i - j|, entries > 200 set to 0
            ad = jnp.abs(i - j)
            return jnp.where(ad > 200, 0, ad).astype(jnp.float32)

        def dilated_parts(i, j):
            # kron(A, eye(d))[i, j] == A[i//d, j//d] * (i % d == j % d)
            # NOTE: float-reciprocal integer divide + exact float equality are
            # safe while i, j stay far below f32 exactness limits (checked in
            # the wrapper).
            i_f = i.astype(jnp.float32)
            j_f = j.astype(jnp.float32)
            i_d = jnp.floor((i_f + 0.5) * rd)     # i // d via reciprocal
            j_d = jnp.floor((j_f + 0.5) * rd)
            add = jnp.abs(i_d - j_d)
            L_d = jnp.where(add > 200.0, 0.0, add)
            dmask = (i_f - dd * i_d) == (j_f - dd * j_d)
            return L_d, dmask

        def signed_pow(Lf):
            # base^L for integer-valued L:  sign(base)^L * exp(L * log|base|)
            mag = jnp.exp(Lf * log_abs)
            parity = Lf - 2.0 * jnp.floor(Lf * 0.5)       # L mod 2 in {0, 1}
            return mag * (1.0 - 2.0 * sign_neg * parity)  # no select chain

        def store(val, i, j):
            # torch.tril(REM) - torch.eye(truncation, T)
            val = jnp.where(j <= i, val, 0.0) - (i == j).astype(jnp.float32)
            out_ref[...] = val.astype(out_ref.dtype)

        def regular():
            i, j = indices()
            store(signed_pow(clamped_L(i, j)), i, j)

        def dil_regular():
            i, j = indices()
            L_d, dmask = dilated_parts(i, j)
            store(jnp.where(dmask, signed_pow(L_d), 0.0), i, j)

        def cyclic(trig):
            def body():
                i, j = indices()
                Lf = clamped_L(i, j)
                store(jnp.exp(Lf * log_abs) * trig(th * Lf), i, j)
            return body

        def dil_cyclic(trig):
            def body():
                i, j = indices()
                L_d, dmask = dilated_parts(i, j)
                Lf = clamped_L(i, j)
                store(jnp.where(dmask, trig(th * L_d), 0.0) * trig(th * Lf), i, j)
            return body

        groups = [
            (b0, b1, regular),
            (b1, b2, dil_regular),
            (b2, b3, cyclic(jnp.cos)),
            (b3, b4, cyclic(jnp.sin)),
            (b4, b5, dil_cyclic(jnp.cos)),
            (b5, b6, dil_cyclic(jnp.sin)),
        ]
        live = [(lo, hi, body) for lo, hi, body in groups if hi > lo]
        # Static per-group dispatch: exactly one body runs for each grid step.
        for lo, hi, body in live:
            if len(live) == 1:
                body()
            elif lo == 0:
                pl.when(h < hi)(body)
            elif hi == H:
                pl.when(h >= lo)(body)
            else:
                pl.when(jnp.logical_and(h >= lo, h < hi))(body)

    return kernel


def _vmem_caps():
    """Return (max output-block bytes, vmem_limit_bytes), generation aware."""
    block_cap, vmem_limit = 4 * 1024 * 1024, 32 * 1024 * 1024   # safe (v7x) default
    try:
        vmem = getattr(pltpu.get_tpu_info(), "vmem_capacity_bytes", None)
        if vmem is not None and vmem > 64 * 1024 * 1024:        # v5e / v6e (128 MiB)
            block_cap, vmem_limit = 8 * 1024 * 1024, 64 * 1024 * 1024
    except Exception:
        pass   # no TPU info at trace time -> keep the conservative caps
    return block_cap, vmem_limit


def rem_forward(eta, nu, theta, *, k1, k2, k3, k4, k5, k6, d, truncation, T,
                out_dtype=jnp.float32, max_rows_per_tile=None):
    """Pallas implementation of REM.forward.  eta/nu/theta: shape (8, 1, 1)."""
    # f32-exactness guard for the reciprocal integer divide in the kernel.
    assert T < (1 << 23) and truncation < (1 << 23), "indices exceed f32-safe range"

    d = list(d)  # local copy; replicate the list-mutating d.pop() behaviour
    eta_f = jnp.reshape(eta, (-1,)).astype(jnp.float32)
    nu_f = jnp.reshape(nu, (-1,)).astype(jnp.float32)
    theta_f = jnp.reshape(theta, (-1,)).astype(jnp.float32)

    # scalar transcendentals hoisted out of the per-element path
    lam = jnp.tanh(eta_f)
    gam = jax.nn.sigmoid(nu_f)

    def safe_log_abs(x):
        return jnp.log(jnp.maximum(jnp.abs(x), jnp.float32(1e-30)))

    pops = [d.pop() for _ in range(k4 + k5 + k6)]   # torch's d.pop() order

    zero = jnp.float32(0.0)
    log_abs, sign_neg, thetas, dils = [], [], [], []
    # output head order == torch.concat([regular_rems, cyclic_rems * s]):
    #   [k1 regular][k4 dilated regular][k2 cos | k3 sin][k5 dil cos | k6 dil sin]
    for hh in range(k1):                       # regular heads
        log_abs.append(safe_log_abs(lam[hh]))
        sign_neg.append((lam[hh] < 0).astype(jnp.float32))
        thetas.append(zero); dils.append(1)
    for ii in range(k4):                       # dilated regular heads
        log_abs.append(safe_log_abs(lam[k1 + ii]))
        sign_neg.append((lam[k1 + ii] < 0).astype(jnp.float32))
        thetas.append(zero); dils.append(pops[ii])
    for cc in range(k2 + k3):                  # cyclic heads (cos then sin)
        log_abs.append(safe_log_abs(gam[cc]))  # gamma > 0 -> sign_neg = 0
        sign_neg.append(zero)
        thetas.append(theta_f[cc]); dils.append(1)
    for jj in range(k5 + k6):                  # dilated cyclic heads
        log_abs.append(zero); sign_neg.append(zero)
        thetas.append(theta_f[k2 + k3 + jj]); dils.append(pops[k4 + jj])

    H = k1 + k2 + k3 + k4 + k5 + k6
    bounds = (0, k1, k1 + k4, k1 + k4 + k2, k1 + k4 + k2 + k3,
              k1 + k4 + k2 + k3 + k5, H)

    logabs_arr = jnp.stack(log_abs).astype(jnp.float32)
    sign_arr = jnp.stack(sign_neg).astype(jnp.float32)
    theta_arr = jnp.stack(thetas).astype(jnp.float32)
    dil_arr = jnp.asarray(dils, dtype=jnp.float32)
    rdil_arr = (1.0 / dil_arr).astype(jnp.float32)

    # --- tiling: full-width (lane-dense) columns, generation-aware row cap ---
    block_cap, vmem_limit = _vmem_caps()
    itemsize = jnp.dtype(out_dtype).itemsize
    if max_rows_per_tile is None:
        max_rows_per_tile = max(8, (block_cap // max(T * itemsize, 1)) // 8 * 8)
    if truncation <= max_rows_per_tile:
        tm, n_row = truncation, 1          # single block per head, no padding
    else:
        tm = max(8, (max_rows_per_tile // 8) * 8)
        n_row = pl.cdiv(truncation, tm)
        # If truncation % tm != 0 the last row block is ragged; Pallas masks the
        # out-of-bounds portion of the writeback, so out_shape stays exact.
    grid = (H, n_row)

    kernel = _make_rem_kernel(bounds)
    fn = pl.pallas_call(
        kernel,
        out_shape=jax.ShapeDtypeStruct((H, truncation, T), out_dtype),
        grid=grid,
        in_specs=[pl.BlockSpec(memory_space=pltpu.MemorySpace.SMEM)] * 5,
        # Default double buffering on the output: per-tile EUP work already
        # hides the writeback DMA, so no pl.Buffered(3) needed.
        out_specs=pl.BlockSpec((pl.Squeezed(), tm, T), lambda h, r: (h, r, 0)),
        compiler_params=pltpu.CompilerParams(
            dimension_semantics=("parallel", "parallel"),
            vmem_limit_bytes=vmem_limit),
    )
    return fn(logabs_arr, sign_arr, theta_arr, dil_arr, rdil_arr)


def rem_reference_numpy(eta, nu, theta, *, k1, k2, k3, k4, k5, k6, d,
                        truncation, T):
    """Pure-numpy transcription of the PyTorch REM.forward (ground truth)."""
    d = list(d)
    eta = np.asarray(eta, np.float64)
    nu = np.asarray(nu, np.float64)
    theta = np.asarray(theta, np.float64)
    lam = np.tanh(eta)                       # (8,1,1)
    gam = 1.0 / (1.0 + np.exp(-nu))          # (8,1,1)

    idx = np.arange(T)
    A = np.abs(idx[:, None] - idx[None, :])  # scipy toeplitz(c=arange(T))
    A = np.where(A > 200, 0, A)
    Lm = A[:truncation].astype(np.float64)
    L = np.stack([Lm] * 8, 0)

    powered_lambda = np.power(lam, L)
    powered_gamma = np.power(gam, L)
    M = L * theta
    s = np.concatenate([
        np.cos(M[:k2]),
        np.sin(M[k2:k2 + k3]),
        np.cos(M[k2 + k3:k2 + k3 + k5]),
        np.sin(M[k2 + k3 + k5:k2 + k3 + k5 + k6]),
    ], 0)
    powered_gamma = powered_gamma[:k2 + k3 + k5 + k6]
    powered_lambda = powered_lambda[:k1 + k4]
    regular = powered_lambda[:k1]
    cyclic = powered_gamma[:k2 + k3]
    for i in range(k4):
        dr = np.kron(powered_lambda[k1 + i], np.eye(d.pop()))
        dr = dr[:L.shape[1], :L.shape[2]]
        regular = np.concatenate([regular, dr[None]], 0)
    for jj in range(k5 + k6):
        dc = np.kron(s[k2 + k3 + jj], np.eye(d.pop()))
        dc = dc[:L.shape[1], :L.shape[2]]
        cyclic = np.concatenate([cyclic, dc[None]], 0)
    REM = np.concatenate([regular, cyclic * s], 0)
    REM = np.tril(REM) - np.eye(REM.shape[1], REM.shape[2])
    return REM


if __name__ == "__main__":
    # k1+...+k6 = 8 heads (matches the hard-coded stack of 8 in the module)
    k1, k2, k3, k4, k5, k6 = 1, 1, 1, 2, 2, 1
    d_list = [2, 2, 3, 2, 2]   # popped from the end; k4+k5+k6 = 5 pops

    key = jax.random.PRNGKey(0)
    ke, kn, kt = jax.random.split(key, 3)
    eta = jax.random.normal(ke, (8, 1, 1), dtype=jnp.float32)
    nu = jax.random.normal(kn, (8, 1, 1), dtype=jnp.float32)
    theta = jax.random.normal(kt, (8, 1, 1), dtype=jnp.float32)

    def check(truncation, T, **kw):
        out = rem_forward(eta, nu, theta, k1=k1, k2=k2, k3=k3, k4=k4, k5=k5,
                          k6=k6, d=d_list, truncation=truncation, T=T, **kw)
        out = jax.block_until_ready(out)
        ref = rem_reference_numpy(np.asarray(eta), np.asarray(nu),
                                  np.asarray(theta), k1=k1, k2=k2, k3=k3,
                                  k4=k4, k5=k5, k6=k6, d=d_list,
                                  truncation=truncation, T=T)
        np.testing.assert_allclose(np.asarray(out), ref, rtol=2e-3, atol=5e-4)

    # single tile per head, tiny shapes
    check(16, 16)
    # non-128-aligned T, exercises full-width blocks and the |i-j|>200 clamp
    check(40, 1300)
    # forced multi-row-tile grid (8 heads x 3 row tiles)
    check(48, 256, max_rows_per_tile=16)

    print("KERNEL_OK")
</pallas_src>

<mosaic_0001>
module attributes {stable_mosaic.version = 11 : i64} {
  func.func @kernel(%arg0: i32, %arg1: i32, %arg2: memref<8xf32, #tpu.memory_space<smem>>, %arg3: memref<8xf32, #tpu.memory_space<smem>>, %arg4: memref<8xf32, #tpu.memory_space<smem>>, %arg5: memref<8xf32, #tpu.memory_space<smem>>, %arg6: memref<8xf32, #tpu.memory_space<smem>>, %arg7: memref<1x16x16xf32, #tpu.memory_space<vmem>>) attributes {dimension_semantics = [#tpu.dimension_semantics<parallel>, #tpu.dimension_semantics<parallel>], iteration_bounds = array<i64: 8, 1>, scalar_prefetch = 0 : i64, scratch_operands = 0 : i64, tpu.core_type = #tpu.core_type<tc>, window_params = [{transform_indices = @transform_0, window_bounds = array<i64: 8>}, {transform_indices = @transform_1, window_bounds = array<i64: 8>}, {transform_indices = @transform_2, window_bounds = array<i64: 8>}, {transform_indices = @transform_3, window_bounds = array<i64: 8>}, {transform_indices = @transform_4, window_bounds = array<i64: 8>}, {transform_indices = @transform_5, window_bounds = array<i64: 1, 16, 16>}]} {
    %c16_i32 = arith.constant 16 : i32
    %0 = arith.muli %arg1, %c16_i32 : i32
    %1 = arith.index_cast %arg0 : i32 to index
    %2 = memref.load %arg2[%1] : memref<8xf32, #tpu.memory_space<smem>>
    %3 = arith.index_cast %arg0 : i32 to index
    %4 = memref.load %arg3[%3] : memref<8xf32, #tpu.memory_space<smem>>
    %5 = arith.index_cast %arg0 : i32 to index
    %6 = memref.load %arg4[%5] : memref<8xf32, #tpu.memory_space<smem>>
    %7 = arith.index_cast %arg0 : i32 to index
    %8 = memref.load %arg5[%7] : memref<8xf32, #tpu.memory_space<smem>>
    %9 = arith.index_cast %arg0 : i32 to index
    %10 = memref.load %arg6[%9] : memref<8xf32, #tpu.memory_space<smem>>
    %c1_i32 = arith.constant 1 : i32
    %11 = arith.cmpi slt, %arg0, %c1_i32 : i32
    %12 = arith.extui %11 : i1 to i32
    %c0_i32 = arith.constant 0 : i32
    %13 = arith.cmpi ne, %12, %c0_i32 : i32
    scf.if %13 {
      %37 = tpu.iota {dimensions = array<i32: 0>} : vector<16x16xi32>
      %38 = vector.broadcast %0 : i32 to vector<16x16xi32>
      %39 = arith.addi %37, %38 : vector<16x16xi32>
      %40 = tpu.iota {dimensions = array<i32: 1>} : vector<16x16xi32>
      %41 = arith.subi %39, %40 : vector<16x16xi32>
      %42 = math.absi %41 : vector<16x16xi32>
      %c200_i32 = arith.constant 200 : i32
      %43 = vector.broadcast %c200_i32 : i32 to vector<16x16xi32>
      %44 = arith.cmpi sgt, %42, %43 : vector<16x16xi32>
      %c0_i32_10 = arith.constant 0 : i32
      %45 = vector.broadcast %c0_i32_10 : i32 to vector<16x16xi32>
      %46 = arith.select %44, %45, %42 : vector<16x16xi1>, vector<16x16xi32>
      %47 = arith.sitofp %46 : vector<16x16xi32> to vector<16x16xf32>
      %48 = vector.broadcast %2 : f32 to vector<16x16xf32>
      %49 = arith.mulf %47, %48 : vector<16x16xf32>
      %50 = math.exp %49 : vector<16x16xf32>
      %cst = arith.constant 5.000000e-01 : f32
      %51 = vector.broadcast %cst : f32 to vector<16x16xf32>
      %52 = arith.mulf %47, %51 : vector<16x16xf32>
      %53 = math.floor %52 : vector<16x16xf32>
      %cst_11 = arith.constant 2.000000e+00 : f32
      %54 = vector.broadcast %cst_11 : f32 to vector<16x16xf32>
      %55 = arith.mulf %54, %53 : vector<16x16xf32>
      %56 = arith.subf %47, %55 : vector<16x16xf32>
      %cst_12 = arith.constant 2.000000e+00 : f32
      %57 = arith.mulf %cst_12, %4 : f32
      %58 = vector.broadcast %57 : f32 to vector<16x16xf32>
      %59 = arith.mulf %58, %56 : vector<16x16xf32>
      %cst_13 = arith.constant 1.000000e+00 : f32
      %60 = vector.broadcast %cst_13 : f32 to vector<16x16xf32>
      %61 = arith.subf %60, %59 : vector<16x16xf32>
      %62 = arith.mulf %50, %61 : vector<16x16xf32>
      %63 = arith.cmpi sle, %40, %39 : vector<16x16xi32>
      %cst_14 = arith.constant 0.000000e+00 : f32
      %64 = vector.broadcast %cst_14 : f32 to vector<16x16xf32>
      %65 = arith.select %63, %62, %64 : vector<16x16xi1>, vector<16x16xf32>
      %66 = arith.cmpi eq, %39, %40 : vector<16x16xi32>
      %67 = arith.extui %66 : vector<16x16xi1> to vector<16x16xi32>
      %68 = arith.sitofp %67 : vector<16x16xi32> to vector<16x16xf32>
      %69 = arith.subf %65, %68 : vector<16x16xf32>
      %c0 = arith.constant 0 : index
      %c0_15 = arith.constant 0 : index
      %c0_16 = arith.constant 0 : index
      %70 = vector.load %arg7[%c0, %c0_15, %c0_16] : memref<1x16x16xf32, #tpu.memory_space<vmem>>, vector<1x16x16xf32>
      %71 = vector.shape_cast %70 : vector<1x16x16xf32> to vector<16x16xf32>
      %72 = vector.shape_cast %69 : vector<16x16xf32> to vector<1x16x16xf32>
      tpu.vector_store %arg7[%c0, %c0_15, %c0_16], %72 {strides = array<i32>} : memref<1x16x16xf32, #tpu.memory_space<vmem>>, vector<1x16x16xf32>,
    } else {
    }
    %c1_i32_0 = arith.constant 1 : i32
    %14 = arith.cmpi sge, %arg0, %c1_i32_0 : i32
    %c3_i32 = arith.constant 3 : i32
    %15 = arith.cmpi slt, %arg0, %c3_i32 : i32
    %16 = arith.andi %14, %15 : i1
    %17 = arith.extui %16 : i1 to i32
    %c0_i32_1 = arith.constant 0 : i32
    %18 = arith.cmpi ne, %17, %c0_i32_1 : i32
    scf.if %18 {
      %37 = tpu.iota {dimensions = array<i32: 0>} : vector<16x16xi32>
      %38 = vector.broadcast %0 : i32 to vector<16x16xi32>
      %39 = arith.addi %37, %38 : vector<16x16xi32>
      %40 = tpu.iota {dimensions = array<i32: 1>} : vector<16x16xi32>
      %41 = arith.sitofp %39 : vector<16x16xi32> to vector<16x16xf32>
      %42 = arith.sitofp %40 : vector<16x16xi32> to vector<16x16xf32>
      %cst = arith.constant 5.000000e-01 : f32
      %43 = vector.broadcast %cst : f32 to vector<16x16xf32>
      %44 = arith.addf %41, %43 : vector<16x16xf32>
      %45 = vector.broadcast %10 : f32 to vector<16x16xf32>
      %46 = arith.mulf %44, %45 : vector<16x16xf32>
      %47 = math.floor %46 : vector<16x16xf32>
      %cst_10 = arith.constant 5.000000e-01 : f32
      %48 = vector.broadcast %cst_10 : f32 to vector<16x16xf32>
      %49 = arith.addf %42, %48 : vector<16x16xf32>
      %50 = vector.broadcast %10 : f32 to vector<16x16xf32>
      %51 = arith.mulf %49, %50 : vector<16x16xf32>
      %52 = math.floor %51 : vector<16x16xf32>
      %53 = arith.subf %47, %52 : vector<16x16xf32>
      %54 = math.absf %53 : vector<16x16xf32>
      %cst_11 = arith.constant 2.000000e+02 : f32
      %55 = vector.broadcast %cst_11 : f32 to vector<16x16xf32>
      %56 = arith.cmpf ogt, %54, %55 : vector<16x16xf32>
      %cst_12 = arith.constant 0.000000e+00 : f32
      %57 = vector.broadcast %cst_12 : f32 to vector<16x16xf32>
      %58 = arith.select %56, %57, %54 : vector<16x16xi1>, vector<16x16xf32>
      %59 = vector.broadcast %8 : f32 to vector<16x16xf32>
      %60 = arith.mulf %59, %47 : vector<16x16xf32>
      %61 = arith.subf %41, %60 : vector<16x16xf32>
      %62 = vector.broadcast %8 : f32 to vector<16x16xf32>
      %63 = arith.mulf %62, %52 : vector<16x16xf32>
      %64 = arith.subf %42, %63 : vector<16x16xf32>
      %65 = arith.cmpf oeq, %61, %64 : vector<16x16xf32>
      %66 = vector.broadcast %2 : f32 to vector<16x16xf32>
      %67 = arith.mulf %58, %66 : vector<16x16xf32>
      %68 = math.exp %67 : vector<16x16xf32>
      %cst_13 = arith.constant 5.000000e-01 : f32
      %69 = vector.broadcast %cst_13 : f32 to vector<16x16xf32>
      %70 = arith.mulf %58, %69 : vector<16x16xf32>
      %71 = math.floor %70 : vector<16x16xf32>
      %cst_14 = arith.constant 2.000000e+00 : f32
      %72 = vector.broadcast %cst_14 : f32 to vector<16x16xf32>
      %73 = arith.mulf %72, %71 : vector<16x16xf32>
      %74 = arith.subf %58, %73 : vector<16x16xf32>
      %cst_15 = arith.constant 2.000000e+00 : f32
      %75 = arith.mulf %cst_15, %4 : f32
      %76 = vector.broadcast %75 : f32 to vector<16x16xf32>
      %77 = arith.mulf %76, %74 : vector<16x16xf32>
      %cst_16 = arith.constant 1.000000e+00 : f32
      %78 = vector.broadcast %cst_16 : f32 to vector<16x16xf32>
      %79 = arith.subf %78, %77 : vector<16x16xf32>
      %80 = arith.mulf %68, %79 : vector<16x16xf32>
      %cst_17 = arith.constant 0.000000e+00 : f32
      %81 = vector.broadcast %cst_17 : f32 to vector<16x16xf32>
      %82 = arith.select %65, %80, %81 : vector<16x16xi1>, vector<16x16xf32>
      %83 = arith.cmpi sle, %40, %39 : vector<16x16xi32>
      %cst_18 = arith.constant 0.000000e+00 : f32
      %84 = vector.broadcast %cst_18 : f32 to vector<16x16xf32>
      %85 = arith.select %83, %82, %84 : vector<16x16xi1>, vector<16x16xf32>
      %86 = arith.cmpi eq, %39, %40 : vector<16x16xi32>
      %87 = arith.extui %86 : vector<16x16xi1> to vector<16x16xi32>
      %88 = arith.sitofp %87 : vector<16x16xi32> to vector<16x16xf32>
      %89 = arith.subf %85, %88 : vector<16x16xf32>
      %c0 = arith.constant 0 : index
      %c0_19 = arith.constant 0 : index
      %c0_20 = arith.constant 0 : index
      %90 = vector.load %arg7[%c0, %c0_19, %c0_20] : memref<1x16x16xf32, #tpu.memory_space<vmem>>, vector<1x16x16xf32>
      %91 = vector.shape_cast %90 : vector<1x16x16xf32> to vector<16x16xf32>
      %92 = vector.shape_cast %89 : vector<16x16xf32> to vector<1x16x16xf32>
      tpu.vector_store %arg7[%c0, %c0_19, %c0_20], %92 {strides = array<i32>} : memref<1x16x16xf32, #tpu.memory_space<vmem>>, vector<1x16x16xf32>,
    } else {
    }
    %c3_i32_2 = arith.constant 3 : i32
    %19 = arith.cmpi sge, %arg0, %c3_i32_2 : i32
    %c4_i32 = arith.constant 4 : i32
    %20 = arith.cmpi slt, %arg0, %c4_i32 : i32
    %21 = arith.andi %19, %20 : i1
    %22 = arith.extui %21 : i1 to i32
    %c0_i32_3 = arith.constant 0 : i32
    %23 = arith.cmpi ne, %22, %c0_i32_3 : i32
    scf.if %23 {
      %37 = tpu.iota {dimensions = array<i32: 0>} : vector<16x16xi32>
      %38 = vector.broadcast %0 : i32 to vector<16x16xi32>
      %39 = arith.addi %37, %38 : vector<16x16xi32>
      %40 = tpu.iota {dimensions = array<i32: 1>} : vector<16x16xi32>
      %41 = arith.subi %39, %40 : vector<16x16xi32>
      %42 = math.absi %41 : vector<16x16xi32>
      %c200_i32 = arith.constant 200 : i32
      %43 = vector.broadcast %c200_i32 : i32 to vector<16x16xi32>
      %44 = arith.cmpi sgt, %42, %43 : vector<16x16xi32>
      %c0_i32_10 = arith.constant 0 : i32
      %45 = vector.broadcast %c0_i32_10 : i32 to vector<16x16xi32>
      %46 = arith.select %44, %45, %42 : vector<16x16xi1>, vector<16x16xi32>
      %47 = arith.sitofp %46 : vector<16x16xi32> to vector<16x16xf32>
      %48 = vector.broadcast %2 : f32 to vector<16x16xf32>
      %49 = arith.mulf %47, %48 : vector<16x16xf32>
      %50 = math.exp %49 : vector<16x16xf32>
      %51 = vector.broadcast %6 : f32 to vector<16x16xf32>
      %52 = arith.mulf %51, %47 : vector<16x16xf32>
      %53 = math.cos %52 : vector<16x16xf32>
      %54 = arith.mulf %50, %53 : vector<16x16xf32>
      %55 = arith.cmpi sle, %40, %39 : vector<16x16xi32>
      %cst = arith.constant 0.000000e+00 : f32
      %56 = vector.broadcast %cst : f32 to vector<16x16xf32>
      %57 = arith.select %55, %54, %56 : vector<16x16xi1>, vector<16x16xf32>
      %58 = arith.cmpi eq, %39, %40 : vector<16x16xi32>
      %59 = arith.extui %58 : vector<16x16xi1> to vector<16x16xi32>
      %60 = arith.sitofp %59 : vector<16x16xi32> to vector<16x16xf32>
      %61 = arith.subf %57, %60 : vector<16x16xf32>
      %c0 = arith.constant 0 : index
      %c0_11 = arith.constant 0 : index
      %c0_12 = arith.constant 0 : index
      %62 = vector.load %arg7[%c0, %c0_11, %c0_12] : memref<1x16x16xf32, #tpu.memory_space<vmem>>, vector<1x16x16xf32>
      %63 = vector.shape_cast %62 : vector<1x16x16xf32> to vector<16x16xf32>
      %64 = vector.shape_cast %61 : vector<16x16xf32> to vector<1x16x16xf32>
      tpu.vector_store %arg7[%c0, %c0_11, %c0_12], %64 {strides = array<i32>} : memref<1x16x16xf32, #tpu.memory_space<vmem>>, vector<1x16x16xf32>,
    } else {
    }
    %c4_i32_4 = arith.constant 4 : i32
    %24 = arith.cmpi sge, %arg0, %c4_i32_4 : i32
    %c5_i32 = arith.constant 5 : i32
    %25 = arith.cmpi slt, %arg0, %c5_i32 : i32
    %26 = arith.andi %24, %25 : i1
    %27 = arith.extui %26 : i1 to i32
    %c0_i32_5 = arith.constant 0 : i32
    %28 = arith.cmpi ne, %27, %c0_i32_5 : i32
    scf.if %28 {
      %37 = tpu.iota {dimensions = array<i32: 0>} : vector<16x16xi32>
      %38 = vector.broadcast %0 : i32 to vector<16x16xi32>
      %39 = arith.addi %37, %38 : vector<16x16xi32>
      %40 = tpu.iota {dimensions = array<i32: 1>} : vector<16x16xi32>
      %41 = arith.subi %39, %40 : vector<16x16xi32>
      %42 = math.absi %41 : vector<16x16xi32>
      %c200_i32 = arith.constant 200 : i32
      %43 = vector.broadcast %c200_i32 : i32 to vector<16x16xi32>
      %44 = arith.cmpi sgt, %42, %43 : vector<16x16xi32>
      %c0_i32_10 = arith.constant 0 : i32
      %45 = vector.broadcast %c0_i32_10 : i32 to vector<16x16xi32>
      %46 = arith.select %44, %45, %42 : vector<16x16xi1>, vector<16x16xi32>
      %47 = arith.sitofp %46 : vector<16x16xi32> to vector<16x16xf32>
      %48 = vector.broadcast %2 : f32 to vector<16x16xf32>
      %49 = arith.mulf %47, %48 : vector<16x16xf32>
      %50 = math.exp %49 : vector<16x16xf32>
      %51 = vector.broadcast %6 : f32 to vector<16x16xf32>
      %52 = arith.mulf %51, %47 : vector<16x16xf32>
      %53 = math.sin %52 : vector<16x16xf32>
      %54 = arith.mulf %50, %53 : vector<16x16xf32>
      %55 = arith.cmpi sle, %40, %39 : vector<16x16xi32>
      %cst = arith.constant 0.000000e+00 : f32
      %56 = vector.broadcast %cst : f32 to vector<16x16xf32>
      %57 = arith.select %55, %54, %56 : vector<16x16xi1>, vector<16x16xf32>
      %58 = arith.cmpi eq, %39, %40 : vector<16x16xi32>
      %59 = arith.extui %58 : vector<16x16xi1> to vector<16x16xi32>
      %60 = arith.sitofp %59 : vector<16x16xi32> to vector<16x16xf32>
      %61 = arith.subf %57, %60 : vector<16x16xf32>
      %c0 = arith.constant 0 : index
      %c0_11 = arith.constant 0 : index
      %c0_12 = arith.constant 0 : index
      %62 = vector.load %arg7[%c0, %c0_11, %c0_12] : memref<1x16x16xf32, #tpu.memory_space<vmem>>, vector<1x16x16xf32>
      %63 = vector.shape_cast %62 : vector<1x16x16xf32> to vector<16x16xf32>
      %64 = vector.shape_cast %61 : vector<16x16xf32> to vector<1x16x16xf32>
      tpu.vector_store %arg7[%c0, %c0_11, %c0_12], %64 {strides = array<i32>} : memref<1x16x16xf32, #tpu.memory_space<vmem>>, vector<1x16x16xf32>,
    } else {
    }
    %c5_i32_6 = arith.constant 5 : i32
    %29 = arith.cmpi sge, %arg0, %c5_i32_6 : i32
    %c7_i32 = arith.constant 7 : i32
    %30 = arith.cmpi slt, %arg0, %c7_i32 : i32
    %31 = arith.andi %29, %30 : i1
    %32 = arith.extui %31 : i1 to i32
    %c0_i32_7 = arith.constant 0 : i32
    %33 = arith.cmpi ne, %32, %c0_i32_7 : i32
    scf.if %33 {
      %37 = tpu.iota {dimensions = array<i32: 0>} : vector<16x16xi32>
      %38 = vector.broadcast %0 : i32 to vector<16x16xi32>
      %39 = arith.addi %37, %38 : vector<16x16xi32>
      %40 = tpu.iota {dimensions = array<i32: 1>} : vector<16x16xi32>
      %41 = arith.sitofp %39 : vector<16x16xi32> to vector<16x16xf32>
      %42 = arith.sitofp %40 : vector<16x16xi32> to vector<16x16xf32>
      %cst = arith.constant 5.000000e-01 : f32
      %43 = vector.broadcast %cst : f32 to vector<16x16xf32>
      %44 = arith.addf %41, %43 : vector<16x16xf32>
      %45 = vector.broadcast %10 : f32 to vector<16x16xf32>
      %46 = arith.mulf %44, %45 : vector<16x16xf32>
      %47 = math.floor %46 : vector<16x16xf32>
      %cst_10 = arith.constant 5.000000e-01 : f32
      %48 = vector.broadcast %cst_10 : f32 to vector<16x16xf32>
      %49 = arith.addf %42, %48 : vector<16x16xf32>
      %50 = vector.broadcast %10 : f32 to vector<16x16xf32>
      %51 = arith.mulf %49, %50 : vector<16x16xf32>
      %52 = math.floor %51 : vector<16x16xf32>
      %53 = arith.subf %47, %52 : vector<16x16xf32>
      %54 = math.absf %53 : vector<16x16xf32>
      %cst_11 = arith.constant 2.000000e+02 : f32
      %55 = vector.broadcast %cst_11 : f32 to vector<16x16xf32>
      %56 = arith.cmpf ogt, %54, %55 : vector<16x16xf32>
      %cst_12 = arith.constant 0.000000e+00 : f32
      %57 = vector.broadcast %cst_12 : f32 to vector<16x16xf32>
      %58 = arith.select %56, %57, %54 : vector<16x16xi1>, vector<16x16xf32>
      %59 = vector.broadcast %8 : f32 to vector<16x16xf32>
      %60 = arith.mulf %59, %47 : vector<16x16xf32>
      %61 = arith.subf %41, %60 : vector<16x16xf32>
      %62 = vector.broadcast %8 : f32 to vector<16x16xf32>
      %63 = arith.mulf %62, %52 : vector<16x16xf32>
      %64 = arith.subf %42, %63 : vector<16x16xf32>
      %65 = arith.cmpf oeq, %61, %64 : vector<16x16xf32>
      %66 = arith.subi %39, %40 : vector<16x16xi32>
      %67 = math.absi %66 : vector<16x16xi32>
      %c200_i32 = arith.constant 200 : i32
      %68 = vector.broadcast %c200_i32 : i32 to vector<16x16xi32>
      %69 = arith.cmpi sgt, %67, %68 : vector<16x16xi32>
      %c0_i32_13 = arith.constant 0 : i32
      %70 = vector.broadcast %c0_i32_13 : i32 to vector<16x16xi32>
      %71 = arith.select %69, %70, %67 : vector<16x16xi1>, vector<16x16xi32>
      %72 = arith.sitofp %71 : vector<16x16xi32> to vector<16x16xf32>
      %73 = vector.broadcast %6 : f32 to vector<16x16xf32>
      %74 = arith.mulf %73, %58 : vector<16x16xf32>
      %75 = math.cos %74 : vector<16x16xf32>
      %cst_14 = arith.constant 0.000000e+00 : f32
      %76 = vector.broadcast %cst_14 : f32 to vector<16x16xf32>
      %77 = arith.select %65, %75, %76 : vector<16x16xi1>, vector<16x16xf32>
      %78 = vector.broadcast %6 : f32 to vector<16x16xf32>
      %79 = arith.mulf %78, %72 : vector<16x16xf32>
      %80 = math.cos %79 : vector<16x16xf32>
      %81 = arith.mulf %77, %80 : vector<16x16xf32>
      %82 = arith.cmpi sle, %40, %39 : vector<16x16xi32>
      %cst_15 = arith.constant 0.000000e+00 : f32
      %83 = vector.broadcast %cst_15 : f32 to vector<16x16xf32>
      %84 = arith.select %82, %81, %83 : vector<16x16xi1>, vector<16x16xf32>
      %85 = arith.cmpi eq, %39, %40 : vector<16x16xi32>
      %86 = arith.extui %85 : vector<16x16xi1> to vector<16x16xi32>
      %87 = arith.sitofp %86 : vector<16x16xi32> to vector<16x16xf32>
      %88 = arith.subf %84, %87 : vector<16x16xf32>
      %c0 = arith.constant 0 : index
      %c0_16 = arith.constant 0 : index
      %c0_17 = arith.constant 0 : index
      %89 = vector.load %arg7[%c0, %c0_16, %c0_17] : memref<1x16x16xf32, #tpu.memory_space<vmem>>, vector<1x16x16xf32>
      %90 = vector.shape_cast %89 : vector<1x16x16xf32> to vector<16x16xf32>
      %91 = vector.shape_cast %88 : vector<16x16xf32> to vector<1x16x16xf32>
      tpu.vector_store %arg7[%c0, %c0_16, %c0_17], %91 {strides = array<i32>} : memref<1x16x16xf32, #tpu.memory_space<vmem>>, vector<1x16x16xf32>,
    } else {
    }
    %c7_i32_8 = arith.constant 7 : i32
    %34 = arith.cmpi sge, %arg0, %c7_i32_8 : i32
    %35 = arith.extui %34 : i1 to i32
    %c0_i32_9 = arith.constant 0 : i32
    %36 = arith.cmpi ne, %35, %c0_i32_9 : i32
    scf.if %36 {
      %37 = tpu.iota {dimensions = array<i32: 0>} : vector<16x16xi32>
      %38 = vector.broadcast %0 : i32 to vector<16x16xi32>
      %39 = arith.addi %37, %38 : vector<16x16xi32>
      %40 = tpu.iota {dimensions = array<i32: 1>} : vector<16x16xi32>
      %41 = arith.sitofp %39 : vector<16x16xi32> to vector<16x16xf32>
      %42 = arith.sitofp %40 : vector<16x16xi32> to vector<16x16xf32>
      %cst = arith.constant 5.000000e-01 : f32
      %43 = vector.broadcast %cst : f32 to vector<16x16xf32>
      %44 = arith.addf %41, %43 : vector<16x16xf32>
      %45 = vector.broadcast %10 : f32 to vector<16x16xf32>
      %46 = arith.mulf %44, %45 : vector<16x16xf32>
      %47 = math.floor %46 : vector<16x16xf32>
      %cst_10 = arith.constant 5.000000e-01 : f32
      %48 = vector.broadcast %cst_10 : f32 to vector<16x16xf32>
      %49 = arith.addf %42, %48 : vector<16x16xf32>
      %50 = vector.broadcast %10 : f32 to vector<16x16xf32>
      %51 = arith.mulf %49, %50 : vector<16x16xf32>
      %52 = math.floor %51 : vector<16x16xf32>
      %53 = arith.subf %47, %52 : vector<16x16xf32>
      %54 = math.absf %53 : vector<16x16xf32>
      %cst_11 = arith.constant 2.000000e+02 : f32
      %55 = vector.broadcast %cst_11 : f32 to vector<16x16xf32>
      %56 = arith.cmpf ogt, %54, %55 : vector<16x16xf32>
      %cst_12 = arith.constant 0.000000e+00 : f32
      %57 = vector.broadcast %cst_12 : f32 to vector<16x16xf32>
      %58 = arith.select %56, %57, %54 : vector<16x16xi1>, vector<16x16xf32>
      %59 = vector.broadcast %8 : f32 to vector<16x16xf32>
      %60 = arith.mulf %59, %47 : vector<16x16xf32>
      %61 = arith.subf %41, %60 : vector<16x16xf32>
      %62 = vector.broadcast %8 : f32 to vector<16x16xf32>
      %63 = arith.mulf %62, %52 : vector<16x16xf32>
      %64 = arith.subf %42, %63 : vector<16x16xf32>
      %65 = arith.cmpf oeq, %61, %64 : vector<16x16xf32>
      %66 = arith.subi %39, %40 : vector<16x16xi32>
      %67 = math.absi %66 : vector<16x16xi32>
      %c200_i32 = arith.constant 200 : i32
      %68 = vector.broadcast %c200_i32 : i32 to vector<16x16xi32>
      %69 = arith.cmpi sgt, %67, %68 : vector<16x16xi32>
      %c0_i32_13 = arith.constant 0 : i32
      %70 = vector.broadcast %c0_i32_13 : i32 to vector<16x16xi32>
      %71 = arith.select %69, %70, %67 : vector<16x16xi1>, vector<16x16xi32>
      %72 = arith.sitofp %71 : vector<16x16xi32> to vector<16x16xf32>
      %73 = vector.broadcast %6 : f32 to vector<16x16xf32>
      %74 = arith.mulf %73, %58 : vector<16x16xf32>
      %75 = math.sin %74 : vector<16x16xf32>
      %cst_14 = arith.constant 0.000000e+00 : f32
      %76 = vector.broadcast %cst_14 : f32 to vector<16x16xf32>
      %77 = arith.select %65, %75, %76 : vector<16x16xi1>, vector<16x16xf32>
      %78 = vector.broadcast %6 : f32 to vector<16x16xf32>
      %79 = arith.mulf %78, %72 : vector<16x16xf32>
      %80 = math.sin %79 : vector<16x16xf32>
      %81 = arith.mulf %77, %80 : vector<16x16xf32>
      %82 = arith.cmpi sle, %40, %39 : vector<16x16xi32>
      %cst_15 = arith.constant 0.000000e+00 : f32
      %83 = vector.broadcast %cst_15 : f32 to vector<16x16xf32>
      %84 = arith.select %82, %81, %83 : vector<16x16xi1>, vector<16x16xf32>
      %85 = arith.cmpi eq, %39, %40 : vector<16x16xi32>
      %86 = arith.extui %85 : vector<16x16xi1> to vector<16x16xi32>
      %87 = arith.sitofp %86 : vector<16x16xi32> to vector<16x16xf32>
      %88 = arith.subf %84, %87 : vector<16x16xf32>
      %c0 = arith.constant 0 : index
      %c0_16 = arith.constant 0 : index
      %c0_17 = arith.constant 0 : index
      %89 = vector.load %arg7[%c0, %c0_16, %c0_17] : memref<1x16x16xf32, #tpu.memory_space<vmem>>, vector<1x16x16xf32>
      %90 = vector.shape_cast %89 : vector<1x16x16xf32> to vector<16x16xf32>
      %91 = vector.shape_cast %88 : vector<16x16xf32> to vector<1x16x16xf32>
      tpu.vector_store %arg7[%c0, %c0_16, %c0_17], %91 {strides = array<i32>} : memref<1x16x16xf32, #tpu.memory_space<vmem>>, vector<1x16x16xf32>,
    } else {
    }
    return
  }
  func.func @transform_0(%arg0: i32, %arg1: i32) -> i32 {
    %c0_i32 = arith.constant 0 : i32
    %c0_i32_0 = arith.constant 0 : i32
    return %c0_i32 : i32
  }
  func.func @transform_1(%arg0: i32, %arg1: i32) -> i32 {
    %c0_i32 = arith.constant 0 : i32
    %c0_i32_0 = arith.constant 0 : i32
    return %c0_i32 : i32
  }
  func.func @transform_2(%arg0: i32, %arg1: i32) -> i32 {
    %c0_i32 = arith.constant 0 : i32
    %c0_i32_0 = arith.constant 0 : i32
    return %c0_i32 : i32
  }
  func.func @transform_3(%arg0: i32, %arg1: i32) -> i32 {
    %c0_i32 = arith.constant 0 : i32
    %c0_i32_0 = arith.constant 0 : i32
    return %c0_i32 : i32
  }
  func.func @transform_4(%arg0: i32, %arg1: i32) -> i32 {
    %c0_i32 = arith.constant 0 : i32
    %c0_i32_0 = arith.constant 0 : i32
    return %c0_i32 : i32
  }
  func.func @transform_5(%arg0: i32, %arg1: i32) -> (i32, i32, i32) {
    %c0_i32 = arith.constant 0 : i32
    %c0_i32_0 = arith.constant 0 : i32
    return %arg0, %arg1, %c0_i32 : i32, i32, i32
  }
}

</mosaic_0001>

<llo_original>
// kernel: tpu_custom_call.1
$region0: #{tpu_custom_call.1}
  #allocation0 [shape = 'u32[]', space=smem, size = 0x4, offset = 0x4, fixed_abs, tag = 'smem constant byte address 0x4 - core index']
  #allocation1 [shape = 'u32[72,128]{1,0:T(1,128)}', space=vmem, size = 0x9000, scoped, tag = 'internal scratch']
  %s0 = inlined_call_operand.hbm [shape: f32[8], index: 0, kind: input, shape index: {}]
  %s1 = inlined_call_operand.hbm [shape: f32[8], index: 1, kind: input, shape index: {}]
  %s2 = inlined_call_operand.vmem [shape: f32[8], index: 2, kind: input, shape index: {}]
  %s3 = inlined_call_operand.vmem [shape: f32[8], index: 3, kind: input, shape index: {}]
  %s4 = inlined_call_operand.vmem [shape: f32[8], index: 4, kind: input, shape index: {}]
  %s5 = inlined_call_operand.hbm [shape: f32[8,16,16], index: 5, kind: output, shape index: {}]
  %s6 = sld [smem:[#allocation0]]
  $region97: #{tpu_custom_call.1} parent=0
    _
  %s8 = ssub.s32 1, %s6
  %s9 = scalar_select 0, %s8, %s6
  $region1: #{tpu_custom_call.1} parent=0
    #allocation2 [shape = 'u8[512]{0}', space=smem, size = 0x200, scoped, tag = 'input window, operand 0, single buffered']
    #allocation3 [shape = 's32[2]{0}', space=sflag, size = 0x8, scoped, tag = 'scoped memory for tpu_custom_call.1']
    #allocation4 [shape = 's32[2]{0}', space=sflag, size = 0x8, scoped, tag = 'scoped memory for tpu_custom_call.1']
    #allocation5 [shape = 's32[2]{0}', space=sflag, size = 0x8, scoped, tag = 'scoped memory for tpu_custom_call.1']
    #allocation6 [shape = 'u8[512]{0}', space=smem, size = 0x200, scoped, tag = 'input window, operand 1, single buffered']
    #allocation7 [shape = 's32[1]{0}', space=sflag, size = 0x4, scoped, tag = 'scoped memory for tpu_custom_call.1']
    #allocation8 [shape = 'u8[512]{0}', space=smem, size = 0x200, scoped, tag = 'input window, operand 2, single buffered']
    #allocation9 [shape = 'u8[512]{0}', space=smem, size = 0x200, scoped, tag = 'input window, operand 3, single buffered']
    #allocation10 [shape = 's32[1]{0}', space=sflag, size = 0x4, scoped, tag = 'scoped memory for tpu_custom_call.1']
    #allocation11 [shape = 'u8[512]{0}', space=smem, size = 0x200, scoped, tag = 'input window, operand 4, single buffered']
    #allocation12 [shape = 'u8[16384]{0}', space=vmem, size = 0x4000, scoped, tag = 'output window, operand 0']
    %10 = vsyncpa [#allocation4], 0
    %11 = vsyncpa [#allocation7], 0
    %12 = vsyncpa [#allocation5], 0
    %13 = vsyncpa [#allocation10], 0
    %14 = vsyncpa [#allocation3], 0
    %s15 = scalar_lea.sflag [#allocation3], 1
    %16 = vsyncpa %s15, 0
    loop: start=0, step=1, limit=10
    $region2: #{tpu_custom_call.1} parent=1 // loop_pre_header
      _
    $region3: #{tpu_custom_call.1} parent=1 // loop_header
      %s18 = sphi 0, %s22
      %p19 = scmp.ge.s32.totalorder %s18, 10
      %s25 = sphi 0, %s37
      %s26 = sphi 0, %s33
      %s27 = sphi 0, %s25
      %s28 = sphi 0, %s26
      %s29 = sphi 0, %s27
      %s30 = sphi 0, %s28
      %s38 = sphi 0, %s38
      %s40 = sphi 0, %s38
      %s41 = sphi 0, %s40
      %s55 = sphi 0, %s41
      %s59 = sphi 0, %s59
      %s61 = sphi 0, %s59
      %s62 = sphi 0, %s61
      %s76 = sphi 0, %s62
      %s80 = sphi 0, %s80
      %s82 = sphi 0, %s80
      %s83 = sphi 0, %s82
      %s97 = sphi 0, %s83
      %s101 = sphi 0, %s101
      %s103 = sphi 0, %s101
      %s104 = sphi 0, %s103
      %s118 = sphi 0, %s104
      %s122 = sphi 0, %s122
      %s124 = sphi 0, %s122
      %s125 = sphi 0, %s124
      %s139 = sphi 0, %s125
      %s147 = sphi 0, %s149
      %s150 = sphi 0, %s147
      %s151 = sphi 0, %s150
      %s167 = sphi 0, %s151
    $region4: #{tpu_custom_call.1} parent=1 // loop_header_branch
      %21 = sbr.rel (%p19) target = $region8
    $region5: #{tpu_custom_call.1} parent=1 // loop_body
      %s23 = ssub.s32 %s18, 1
      %s24 = ssub.s32 %s18, 2
      %s31 = sadd.s32 1, %s26
      %p32 = scmp.ge.s32.totalorder %s31, 1
      %s33 = scalar_select %p32, 0, %s31
      %s34 = sadd.s32 1, %s25
      %s35 = scalar_select %p32, %s34, %s25
      %p36 = scmp.ge.s32.totalorder %s35, 8
      %s37 = scalar_select %p36, 0, %s35
      %s39 = sadd.s32 %s38, 1
      %p42 = scmp.eq.s32.totalorder %s18, 7
      %p43 = scmp.ne.s32.totalorder %s38, %s40
      %p44 = scmp.eq.s32.totalorder %s18, 0
      %p45 = por %p43, %p44
      %p46 = scmp.ne.s32.totalorder %s38, %s40
      %p47 = scmp.eq.s32.totalorder %s23, 7
      %p48 = por %p46, %p47
      %p49 = scmp.ne.s32.totalorder %s40, %s41
      %p50 = scmp.eq.s32.totalorder %s23, 0
      %p51 = por %p49, %p50
      %p52 = scmp.ne.s32.totalorder %s40, %s41
      %p53 = scmp.eq.s32.totalorder %s24, 7
      %p54 = por %p52, %p53
      %p56 = scmp.ne.s32.totalorder %s41, %s55
      %p57 = scmp.eq.s32.totalorder %s24, 0
      %p58 = por %p56, %p57
      %s60 = sadd.s32 %s59, 1
      %p63 = scmp.eq.s32.totalorder %s18, 7
      %p64 = scmp.ne.s32.totalorder %s59, %s61
      %p65 = scmp.eq.s32.totalorder %s18, 0
      %p66 = por %p64, %p65
      %p67 = scmp.ne.s32.totalorder %s59, %s61
      %p68 = scmp.eq.s32.totalorder %s23, 7
      %p69 = por %p67, %p68
      %p70 = scmp.ne.s32.totalorder %s61, %s62
      %p71 = scmp.eq.s32.totalorder %s23, 0
      %p72 = por %p70, %p71
      %p73 = scmp.ne.s32.totalorder %s61, %s62
      %p74 = scmp.eq.s32.totalorder %s24, 7
      %p75 = por %p73, %p74
      %p77 = scmp.ne.s32.totalorder %s62, %s76
      %p78 = scmp.eq.s32.totalorder %s24, 0
      %p79 = por %p77, %p78
      %s81 = sadd.s32 %s80, 1
      %p84 = scmp.eq.s32.totalorder %s18, 7
      %p85 = scmp.ne.s32.totalorder %s80, %s82
      %p86 = scmp.eq.s32.totalorder %s18, 0
      %p87 = por %p85, %p86
      %p88 = scmp.ne.s32.totalorder %s80, %s82
      %p89 = scmp.eq.s32.totalorder %s23, 7
      %p90 = por %p88, %p89
      %p91 = scmp.ne.s32.totalorder %s82, %s83
      %p92 = scmp.eq.s32.totalorder %s23, 0
      %p93 = por %p91, %p92
      %p94 = scmp.ne.s32.totalorder %s82, %s83
      %p95 = scmp.eq.s32.totalorder %s24, 7
      %p96 = por %p94, %p95
      %p98 = scmp.ne.s32.totalorder %s83, %s97
      %p99 = scmp.eq.s32.totalorder %s24, 0
      %p100 = por %p98, %p99
      %s102 = sadd.s32 %s101, 1
      %p105 = scmp.eq.s32.totalorder %s18, 7
      %p106 = scmp.ne.s32.totalorder %s101, %s103
      %p107 = scmp.eq.s32.totalorder %s18, 0
      %p108 = por %p106, %p107
      %p109 = scmp.ne.s32.totalorder %s101, %s103
      %p110 = scmp.eq.s32.totalorder %s23, 7
      %p111 = por %p109, %p110
      %p112 = scmp.ne.s32.totalorder %s103, %s104
      %p113 = scmp.eq.s32.totalorder %s23, 0
      %p114 = por %p112, %p113
      %p115 = scmp.ne.s32.totalorder %s103, %s104
      %p116 = scmp.eq.s32.totalorder %s24, 7
      %p117 = por %p115, %p116
      %p119 = scmp.ne.s32.totalorder %s104, %s118
      %p120 = scmp.eq.s32.totalorder %s24, 0
      %p121 = por %p119, %p120
      %s123 = sadd.s32 %s122, 1
      %p126 = scmp.eq.s32.totalorder %s18, 7
      %p127 = scmp.ne.s32.totalorder %s122, %s124
      %p128 = scmp.eq.s32.totalorder %s18, 0
      %p129 = por %p127, %p128
      %p130 = scmp.ne.s32.totalorder %s122, %s124
      %p131 = scmp.eq.s32.totalorder %s23, 7
      %p132 = por %p130, %p131
      %p133 = scmp.ne.s32.totalorder %s124, %s125
      %p134 = scmp.eq.s32.totalorder %s23, 0
      %p135 = por %p133, %p134
      %p136 = scmp.ne.s32.totalorder %s124, %s125
      %p137 = scmp.eq.s32.totalorder %s24, 7
      %p138 = por %p136, %p137
      %p140 = scmp.ne.s32.totalorder %s125, %s139
      %p141 = scmp.eq.s32.totalorder %s24, 0
      %p142 = por %p140, %p141
      %s143 = ssub.s32 %s25, %s37
      %s144 = ssub.s32 %s26, %s33
      %s145 = sor.u32 %s143, %s144
      %p146 = scmp.eq.s32.totalorder %s145, 0
      %s148 = sadd.s32 %s147, 1
      %s149 = scalar_select %p146, %s147, %s148
      %p152 = pneg %p146
      %p153 = scmp.eq.s32.totalorder %s18, 7
      %p154 = por %p152, %p153
      %p155 = scmp.ne.s32.totalorder %s147, %s150
      %p156 = scmp.eq.s32.totalorder %s18, 0
      %p157 = por %p155, %p156
      %p158 = scmp.ne.s32.totalorder %s147, %s150
      %p159 = scmp.eq.s32.totalorder %s23, 7
      %p160 = por %p158, %p159
      %p161 = scmp.ne.s32.totalorder %s150, %s151
      %p162 = scmp.eq.s32.totalorder %s23, 0
      %p163 = por %p161, %p162
      %p164 = scmp.ne.s32.totalorder %s150, %s151
      %p165 = scmp.eq.s32.totalorder %s24, 7
      %p166 = por %p164, %p165
      %p168 = scmp.ne.s32.totalorder %s151, %s167
      %p169 = scmp.eq.s32.totalorder %s24, 0
      %p170 = por %p168, %p169
      %p171 = scmp.le.s32.totalorder 1, %s18
      %p172 = scmp.lt.s32.totalorder %s18, 9
      %p173 = pnand %p171, %p172
      %p174 = pneg %p173
      // Predicated region
      $region9: #{tpu_custom_call.1} parent=5 // pred_check
        _
      $region10: #{tpu_custom_call.1} parent=5 // pred_check_branch
        %176 = sbr.rel (%p173) target = $region12
      $region11: #{tpu_custom_call.1} parent=5 // pred_region
        %s177 = ssub.s32 %s18, 1
        // Predicated region
        $region13: #{tpu_custom_call.1} parent=11 // pred_check
          %p178 = pneg %p51
        $region14: #{tpu_custom_call.1} parent=11 // pred_check_branch
          %180 = sbr.rel (%p178) target = $region16
        $region15: #{tpu_custom_call.1} parent=11 // pred_region
          %182 = vsyncadd [#allocation4], 0
          %s184 = sshll.u32 %s0, 4
          %s185 = int_to_ptr.hbm [resolvable:$true] %s184
          %187 = dma.hbm_to_smem %s185, 16, [#allocation2], [#allocation4]
        $region16: #{tpu_custom_call.1} parent=11 // pred_fallthru
          _
        // Predicated region
        $region17: #{tpu_custom_call.1} parent=11 // pred_check
          %p188 = pneg %p72
        $region18: #{tpu_custom_call.1} parent=11 // pred_check_branch
          %190 = sbr.rel (%p188) target = $region20
        $region19: #{tpu_custom_call.1} parent=11 // pred_region
          %192 = vsyncadd [#allocation7], 0
          %s194 = sshll.u32 %s1, 4
          %s195 = int_to_ptr.hbm [resolvable:$true] %s194
          %197 = dma.hbm_to_smem %s195, 16, [#allocation6], [#allocation7]
        $region20: #{tpu_custom_call.1} parent=11 // pred_fallthru
          _
        // Predicated region
        $region21: #{tpu_custom_call.1} parent=11 // pred_check
          %p198 = pneg %p93
        $region22: #{tpu_custom_call.1} parent=11 // pred_check_branch
          %200 = sbr.rel (%p198) target = $region24
        $region23: #{tpu_custom_call.1} parent=11 // pred_region
          %202 = vsyncadd [#allocation5], 0
          %s204 = sshll.u32 %s2, 4
          %s205 = int_to_ptr.vmem [resolvable:$true] %s204
          %207 = dma.vmem_to_smem %s205, 16, [#allocation8], [#allocation5]
        $region24: #{tpu_custom_call.1} parent=11 // pred_fallthru
          _
        // Predicated region
        $region25: #{tpu_custom_call.1} parent=11 // pred_check
          %p208 = pneg %p114
        $region26: #{tpu_custom_call.1} parent=11 // pred_check_branch
          %210 = sbr.rel (%p208) target = $region28
        $region27: #{tpu_custom_call.1} parent=11 // pred_region
          %212 = vsyncadd [#allocation10], 0
          %s214 = sshll.u32 %s3, 4
          %s215 = int_to_ptr.vmem [resolvable:$true] %s214
          %217 = dma.vmem_to_smem %s215, 16, [#allocation9], [#allocation10]
        $region28: #{tpu_custom_call.1} parent=11 // pred_fallthru
          _
        // Predicated region
        $region29: #{tpu_custom_call.1} parent=11 // pred_check
          %p218 = pneg %p135
        $region30: #{tpu_custom_call.1} parent=11 // pred_check_branch
          %220 = sbr.rel (%p218) target = $region32
        $region31: #{tpu_custom_call.1} parent=11 // pred_region
          %222 = vsyncadd [#allocation10], 0
          %s224 = sshll.u32 %s4, 4
          %s225 = int_to_ptr.vmem [resolvable:$true] %s224
          %227 = dma.vmem_to_smem %s225, 16, [#allocation11], [#allocation10]
        $region32: #{tpu_custom_call.1} parent=11 // pred_fallthru
          _
      $region12: #{tpu_custom_call.1} parent=5 // pred_fallthru
        _
      %p228 = scmp.lt.s32.totalorder %s18, 8
      // Predicated region
      $region33: #{tpu_custom_call.1} parent=5 // pred_check
        %p229 = pneg %p228
      $region34: #{tpu_custom_call.1} parent=5 // pred_check_branch
        %231 = sbr.rel (%p229) target = $region36
      $region35: #{tpu_custom_call.1} parent=5 // pred_region
        _
      $region36: #{tpu_custom_call.1} parent=5 // pred_fallthru
        _
      %p232 = scmp.le.s32.totalorder 1, %s18
      %p233 = scmp.lt.s32.totalorder %s18, 9
      %p234 = pnand %p232, %p233
      %p235 = pneg %p234
      // Predicated region
      $region37: #{tpu_custom_call.1} parent=5 // pred_check
        _
      $region38: #{tpu_custom_call.1} parent=5 // pred_check_branch
        %237 = sbr.rel (%p234) target = $region40
      $region39: #{tpu_custom_call.1} parent=5 // pred_region
        %s238 = ssub.s32 %s18, 1
        // Predicated region
        $region41: #{tpu_custom_call.1} parent=39 // pred_check
          %p239 = pneg %p51
        $region42: #{tpu_custom_call.1} parent=39 // pred_check_branch
          %241 = sbr.rel (%p239) target = $region44
        $region43: #{tpu_custom_call.1} parent=39 // pred_region
          %243 = dma.done [#allocation4], 16
        $region44: #{tpu_custom_call.1} parent=39 // pred_fallthru
          _
        // Predicated region
        $region45: #{tpu_custom_call.1} parent=39 // pred_check
          %p244 = pneg %p72
        $region46: #{tpu_custom_call.1} parent=39 // pred_check_branch
          %246 = sbr.rel (%p244) target = $region48
        $region47: #{tpu_custom_call.1} parent=39 // pred_region
          %248 = dma.done [#allocation7], 16
        $region48: #{tpu_custom_call.1} parent=39 // pred_fallthru
          _
        // Predicated region
        $region49: #{tpu_custom_call.1} parent=39 // pred_check
          %p249 = pneg %p93
        $region50: #{tpu_custom_call.1} parent=39 // pred_check_branch
          %251 = sbr.rel (%p249) target = $region52
        $region51: #{tpu_custom_call.1} parent=39 // pred_region
          %253 = dma.done [#allocation5], 16
        $region52: #{tpu_custom_call.1} parent=39 // pred_fallthru
          _
        // Predicated region
        $region53: #{tpu_custom_call.1} parent=39 // pred_check
          %p254 = pneg %p114
        $region54: #{tpu_custom_call.1} parent=39 // pred_check_branch
          %256 = sbr.rel (%p254) target = $region56
        $region55: #{tpu_custom_call.1} parent=39 // pred_region
          %258 = dma.done [#allocation10], 16
        $region56: #{tpu_custom_call.1} parent=39 // pred_fallthru
          _
        // Predicated region
        $region57: #{tpu_custom_call.1} parent=39 // pred_check
          %p259 = pneg %p135
        $region58: #{tpu_custom_call.1} parent=39 // pred_check_branch
          %261 = sbr.rel (%p259) target = $region60
        $region59: #{tpu_custom_call.1} parent=39 // pred_region
          %263 = dma.done [#allocation10], 16
        $region60: #{tpu_custom_call.1} parent=39 // pred_fallthru
          _
        %264 = sfence
        %p265 = pneg %p51
        %p266 = pneg %p48
        %p267 = pneg %p72
        %p268 = pneg %p69
        %p269 = pneg %p93
        %p270 = pneg %p90
        %p271 = pneg %p114
        %p272 = pneg %p111
        %p273 = pneg %p135
        %p274 = pneg %p132
        %p275 = pneg %p163
        %p276 = pneg %p160
        %s277 = sand.u32 %s150, 1
        %s278 = scalar_lea.sflag [#allocation3], %s277
        %s279 = sand.u32 %s150, 1
        %s280 = smul.addr %s279, 16
        %s281 = scalar_lea.vmem [#allocation12], %s280
        %s282 = smul.u32 2, %s28
        %s283 = smul.u32 %s28, 16
        %s284 = sld [smem:[#allocation2 + %s27]]
        %s285 = sld [smem:[#allocation6 + %s27]]
        %s286 = sld [smem:[#allocation8 + %s27]]
        %s287 = sld [smem:[#allocation9 + %s27]]
        %s288 = sld [smem:[#allocation11 + %s27]]
        %p289 = scmp.lt.s32.totalorder %s27, 1
        // Predicated region
        $region61: #{tpu_custom_call.1} parent=39 // pred_check
          %p290 = pneg %p289
        $region62: #{tpu_custom_call.1} parent=39 // pred_check_branch
          %292 = sbr.rel (%p290) target = $region64
        $region63: #{tpu_custom_call.1} parent=39 // pred_region
          %v293 = vlaneseq
          %v294 = vshrl.u32 %v293, 7
          %v295 = vadd.s32 %v294, 8
          %v296 = vstv %s283
          %v297 = vadd.s32 %v294, %v296
          %v298 = vadd.s32 %v295, %v296
          %v299 = vlaneseq
          %v300 = vand.u32 %v299, 127
          %v301 = vsub.s32 %v297, %v300
          %v302 = vsub.s32 %v298, %v300
          %vm303 = vcmp.lt.s32.totalorder %v301, 0
          %v304 = vsub.s32 0, %v301
          %v305 = vsel %vm303, %v304, %v301
          %vm306 = vcmp.lt.s32.totalorder %v302, 0
          %v307 = vsub.s32 0, %v302
          %v308 = vsel %vm306, %v307, %v302
          %vm309 = vcmp.gt.s32.totalorder %v305, 200
          %vm310 = vcmp.gt.s32.totalorder %v308, 200
          %v311 = vsel %vm309, 0, %v305
          %v312 = vsel %vm310, 0, %v308
          %v313 = vcvt.s32.f32 %v311
          %v314 = vcvt.s32.f32 %v312
          %v315 = vstv %s284
          %v316 = vmul.f32 %v313, %v315
          %v317 = vmul.f32 %v314, %v315
          %v318 = vmul.f32 %v316, 1.442695
          %v319 = vpow.pop %v318
          %v320 = vmul.f32 %v317, 1.442695
          %v321 = vpow.pop %v320
          %v322 = vmul.f32 %v313, 0.5
          %v323 = vmul.f32 %v314, 0.5
          %v324 = vfloor.f32 %v322
          %v325 = vfloor.f32 %v323
          %v326 = vmul.f32 %v324, 2.0
          %v327 = vmul.f32 %v325, 2.0
          %v328 = vsub.f32 %v313, %v326
          %v329 = vsub.f32 %v314, %v327
          %s330 = smul.f32 %s285, 2.0
          %v331 = vstv %s330
          %v332 = vmul.f32 %v331, %v328
          %v333 = vmul.f32 %v331, %v329
          %v334 = vsub.f32 1.0, %v332
          %v335 = vsub.f32 1.0, %v333
          %v336 = vmul.f32 %v319, %v334
          %v337 = vmul.f32 %v321, %v335
          %vm338 = vcmp.le.s32.totalorder %v300, %v297
          %vm339 = vcmp.le.s32.totalorder %v300, %v298
          %v340 = vsel %vm338, %v336, 0.0
          %v341 = vsel %vm339, %v337, 0.0
          %vm342 = vcmp.eq.s32.totalorder %v297, %v300
          %vm343 = vcmp.eq.s32.totalorder %v298, %v300
          %v344 = vsel %vm342, 1, 0
          %v345 = vsel %vm343, 1, 0
          %v346 = vcvt.s32.f32 %v344
          %v347 = vcvt.s32.f32 %v345
          %v348 = vsub.f32 %v340, %v346
          %v349 = vsub.f32 %v341, %v347
          %vm350 = vcmask 130048
          %351 = vst.msk [vmem:[%s281] sm:$0xff] %vm350, %v348
          %352 = vst.msk [vmem:[%s281 + $0x8] sm:$0xff] %vm350, %v349
        $region64: #{tpu_custom_call.1} parent=39 // pred_fallthru
          _
        %p353 = scmp.ge.s32.totalorder %s27, 1
        %p354 = scmp.lt.s32.totalorder %s27, 3
        %p355 = pnand %p353, %p354
        %p356 = pneg %p355
        // Predicated region
        $region65: #{tpu_custom_call.1} parent=39 // pred_check
          _
        $region66: #{tpu_custom_call.1} parent=39 // pred_check_branch
          %358 = sbr.rel (%p355) target = $region68
        $region67: #{tpu_custom_call.1} parent=39 // pred_region
          %v359 = vlaneseq
          %v360 = vshrl.u32 %v359, 7
          %v361 = vadd.s32 %v360, 8
          %v362 = vstv %s283
          %v363 = vadd.s32 %v360, %v362
          %v364 = vadd.s32 %v361, %v362
          %v365 = vlaneseq
          %v366 = vand.u32 %v365, 127
          %v367 = vcvt.s32.f32 %v363
          %v368 = vcvt.s32.f32 %v364
          %v369 = vcvt.s32.f32 %v366
          %v370 = vadd.f32 %v367, 0.5
          %v371 = vadd.f32 %v368, 0.5
          %v372 = vstv %s288
          %v373 = vmul.f32 %v370, %v372
          %v374 = vmul.f32 %v371, %v372
          %v375 = vfloor.f32 %v373
          %v376 = vfloor.f32 %v374
          %v377 = vadd.f32 %v369, 0.5
          %v378 = vmul.f32 %v377, %v372
          %v379 = vfloor.f32 %v378
          %v380 = vsub.f32 %v375, %v379
          %v381 = vsub.f32 %v376, %v379
          %v382 = vand.u32 2147483647, %v380
          %v383 = vand.u32 2147483647, %v381
          %vm384 = vcmp.gt.f32.partialorder %v382, 200.0
          %vm385 = vcmp.gt.f32.partialorder %v383, 200.0
          %v386 = vsel %vm384, 0.0, %v382
          %v387 = vsel %vm385, 0.0, %v383
          %v388 = vstv %s287
          %v389 = vmul.f32 %v388, %v375
          %v390 = vmul.f32 %v388, %v376
          %v391 = vsub.f32 %v367, %v389
          %v392 = vsub.f32 %v368, %v390
          %v393 = vmul.f32 %v388, %v379
          %v394 = vsub.f32 %v369, %v393
          %vm395 = vcmp.eq.f32.partialorder %v391, %v394
          %vm396 = vcmp.eq.f32.partialorder %v392, %v394
          %v397 = vstv %s284
          %v398 = vmul.f32 %v386, %v397
          %v399 = vmul.f32 %v387, %v397
          %v400 = vmul.f32 %v398, 1.442695
          %v401 = vpow.pop %v400
          %v402 = vmul.f32 %v399, 1.442695
          %v403 = vpow.pop %v402
          %v404 = vmul.f32 %v386, 0.5
          %v405 = vmul.f32 %v387, 0.5
          %v406 = vfloor.f32 %v404
          %v407 = vfloor.f32 %v405
          %v408 = vmul.f32 %v406, 2.0
          %v409 = vmul.f32 %v407, 2.0
          %v410 = vsub.f32 %v386, %v408
          %v411 = vsub.f32 %v387, %v409
          %s412 = smul.f32 %s285, 2.0
          %v413 = vstv %s412
          %v414 = vmul.f32 %v413, %v410
          %v415 = vmul.f32 %v413, %v411
          %v416 = vsub.f32 1.0, %v414
          %v417 = vsub.f32 1.0, %v415
          %v418 = vmul.f32 %v401, %v416
          %v419 = vmul.f32 %v403, %v417
          %v420 = vsel %vm395, %v418, 0.0
          %v421 = vsel %vm396, %v419, 0.0
          %vm422 = vcmp.le.s32.totalorder %v366, %v363
          %vm423 = vcmp.le.s32.totalorder %v366, %v364
          %v424 = vsel %vm422, %v420, 0.0
          %v425 = vsel %vm423, %v421, 0.0
          %vm426 = vcmp.eq.s32.totalorder %v363, %v366
          %vm427 = vcmp.eq.s32.totalorder %v364, %v366
          %v428 = vsel %vm426, 1, 0
          %v429 = vsel %vm427, 1, 0
          %v430 = vcvt.s32.f32 %v428
          %v431 = vcvt.s32.f32 %v429
          %v432 = vsub.f32 %v424, %v430
          %v433 = vsub.f32 %v425, %v431
          %vm434 = vcmask 130048
          %435 = vst.msk [vmem:[%s281] sm:$0xff] %vm434, %v432
          %436 = vst.msk [vmem:[%s281 + $0x8] sm:$0xff] %vm434, %v433
        $region68: #{tpu_custom_call.1} parent=39 // pred_fallthru
          _
        %p437 = scmp.ge.s32.totalorder %s27, 3
        %p438 = scmp.lt.s32.totalorder %s27, 4
        %p439 = pnand %p437, %p438
        %p440 = pneg %p439
        // Predicated region
        $region69: #{tpu_custom_call.1} parent=39 // pred_check
          _
        $region70: #{tpu_custom_call.1} parent=39 // pred_check_branch
          %442 = sbr.rel (%p439) target = $region72
        $region71: #{tpu_custom_call.1} parent=39 // pred_region
          %v443 = vlaneseq
          %v444 = vshrl.u32 %v443, 7
          %v445 = vadd.s32 %v444, 8
          %v446 = vstv %s283
          %v447 = vadd.s32 %v444, %v446
          %v448 = vadd.s32 %v445, %v446
          %v449 = vlaneseq
          %v450 = vand.u32 %v449, 127
          %v451 = vsub.s32 %v447, %v450
          %v452 = vsub.s32 %v448, %v450
          %vm453 = vcmp.lt.s32.totalorder %v451, 0
          %v454 = vsub.s32 0, %v451
          %v455 = vsel %vm453, %v454, %v451
          %vm456 = vcmp.lt.s32.totalorder %v452, 0
          %v457 = vsub.s32 0, %v452
          %v458 = vsel %vm456, %v457, %v452
          %vm459 = vcmp.gt.s32.totalorder %v455, 200
          %vm460 = vcmp.gt.s32.totalorder %v458, 200
          %v461 = vsel %vm459, 0, %v455
          %v462 = vsel %vm460, 0, %v458
          %v463 = vcvt.s32.f32 %v461
          %v464 = vcvt.s32.f32 %v462
          %v465 = vstv %s284
          %v466 = vmul.f32 %v463, %v465
          %v467 = vmul.f32 %v464, %v465
          %v468 = vmul.f32 %v466, 1.442695
          %v469 = vpow.pop %v468
          %v470 = vmul.f32 %v467, 1.442695
          %v471 = vpow.pop %v470
          %v472 = vstv %s286
          %v473 = vmul.f32 %v472, %v463
          %v474 = vmul.f32 %v472, %v464
          %v475 = vand.u32 2147483647, %v473
          %vm476 = vcmp.le.f32.partialorder %v475, 0.7853982
          %vm477 = vcmp.lt.s32.totalorder %v473, 0
          %v478 = vand.u32 %v473, 2139095040
          %v479 = vshrl.u32 %v478, 23
          %v480 = vsub.s32 %v479, 127
          %v481 = vand.u32 2147483647, %v473
          %v482 = vand.u32 %v481, 8388607
          %v483 = vor.u32 %v482, 8388608
          %v484 = vsub.s32 0, %v483
          %v485 = vadd.s32 %v480, 1
          %vm486 = vcmp.gt.s32.totalorder %v485, 0
          %v487 = vsel %vm486, %v485, 0
          %v488 = vshrl.u32 %v487, 5
          %v489 = vand.u32 %v487, 31
          %v490 = vsub.s32 32, %v489
          %v491 = vshrl.u32 683565275, %v490
          %v492 = vshll.u32 683565275, %v489
          %v493 = vshrl.u32 2475754826, %v490
          %v494 = vor.u32 %v492, %v493
          %v495 = vshll.u32 2475754826, %v489
          %v496 = vshrl.u32 2131351028, %v490
          %v497 = vor.u32 %v495, %v496
          %v498 = vshll.u32 2131351028, %v489
          %v499 = vshrl.u32 2102212464, %v490
          %v500 = vor.u32 %v498, %v499
          %v501 = vshll.u32 2102212464, %v489
          %v502 = vshrl.u32 920167782, %v490
          %v503 = vor.u32 %v501, %v502
          %v504 = vshll.u32 920167782, %v489
          %v505 = vshrl.u32 1326507024, %v490
          %v506 = vor.u32 %v504, %v505
          %vm507 = vcmp.lt.s32.totalorder %v488, 1
          %vm508 = vcmp.lt.s32.totalorder %v488, 2
          %vm509 = vcmp.lt.s32.totalorder %v488, 3
          %vm510 = vcmp.lt.s32.totalorder %v488, 4
          %v511 = vsel %vm507, %v491, %v494
          %v512 = vsel %vm510, %v500, 2102212464
          %v513 = vsel %vm509, %v497, %v512
          %v514 = vsel %vm508, %v511, %v513
          %v515 = vsel %vm507, %v494, %v497
          %v516 = vsel %vm510, %v503, 920167782
          %v517 = vsel %vm509, %v500, %v516
          %v518 = vsel %vm508, %v515, %v517
          %v519 = vsel %vm507, %v497, %v500
          %v520 = vsel %vm510, %v506, 1326507024
          %v521 = vsel %vm509, %v503, %v520
          %v522 = vsel %vm508, %v519, %v521
          %v523 = vshll.u32 %v483, 8
          %v524 = vand.u32 %v523, 65535
          %v525 = vshrl.u32 %v523, 16
          %v526 = vand.u32 %v522, 65535
          %v527 = vshrl.u32 %v522, 16
          %v528 = vmul.u32 %v524, %v526
          %v529 = vmul.u32 %v524, %v527
          %v530 = vmul.u32 %v525, %v526
          %v531 = vmul.u32 %v525, %v527
          %v532 = vshll.u32 %v529, 16
          %v533 = vshrl.u32 %v529, 16
          %v534 = vshll.u32 %v530, 16
          %v535 = vshrl.u32 %v530, 16
          %vm536 = vc.u32 %v528, %v532
          %v537 = vsel %vm536, 1, 0
          %v538 = vadd.s32 %v528, %v532
          %v539 = vadd.s32 %v531, %v537
          %vm540 = vc.u32 %v538, %v534
          %v541 = vsel %vm540, 1, 0
          %v542 = vadd.s32 %v538, %v534
          %v543 = vadd.s32 %v539, %v541
          %v544 = vadd.s32 %v543, %v533
          %v545 = vadd.s32 %v544, %v535
          %v546 = vand.u32 %v523, 65535
          %v547 = vshrl.u32 %v523, 16
          %v548 = vand.u32 %v518, 65535
          %v549 = vshrl.u32 %v518, 16
          %v550 = vmul.u32 %v546, %v548
          %v551 = vmul.u32 %v546, %v549
          %v552 = vmul.u32 %v547, %v548
          %v553 = vmul.u32 %v547, %v549
          %v554 = vshll.u32 %v551, 16
          %v555 = vshrl.u32 %v551, 16
          %v556 = vshll.u32 %v552, 16
          %v557 = vshrl.u32 %v552, 16
          %vm558 = vc.u32 %v550, %v554
          %v559 = vsel %vm558, 1, 0
          %v560 = vadd.s32 %v550, %v554
          %v561 = vadd.s32 %v553, %v559
          %vm562 = vc.u32 %v560, %v556
          %v563 = vsel %vm562, 1, 0
          %v564 = vadd.s32 %v560, %v556
          %v565 = vadd.s32 %v561, %v563
          %v566 = vadd.s32 %v565, %v555
          %v567 = vadd.s32 %v566, %v557
          %v568 = vmul.u32 %v523, %v514
          %v569 = vadd.s32 %v545, %v564
          %vm570 = vc.u32 %v545, %v564
          %v571 = vadd.s32 %v567, 1
          %v572 = vsel %vm570, %v571, %v567
          %v573 = vadd.s32 %v568, %v572
          %v574 = vadd.s32 %v573, 536870912
          %v575 = vshrl.u32 %v574, 30
          %v576 = vshll.u32 %v575, 30
          %v577 = vsub.s32 %v573, %v576
          %vm578 = vcmp.lt.s32.totalorder %v577, 0
          %v579 = vsub.s32 0, %v577
          %v580 = vsel %vm578, %v579, %v577
          %v581 = vclz %v580
          %v582 = vsub.s32 %v581, 2
          %vm583 = vcmp.gt.s32.totalorder 0, %v582
          %v584 = vsel %vm583, 0, %v582
          %v585 = vsub.s32 32, %v584
          %v586 = vshll.u32 %v577, %v584
          %v587 = vshrl.u32 %v569, %v585
          %v588 = vor.u32 %v586, %v587
          %v589 = vsub.s32 4294967266, %v584
          %v590 = vadd.s32 %v589, 127
          %v591 = vshll.u32 %v590, 23
          %v592 = vor.u32 4788187, %v591
          %v593 = vand.u32 2147483647, %v592
          %v595 = vcvt.s32.f32 %v588
          %v596 = vmul.f32 %v595, %v593
          %v597 = vxor.u32 %v596, 2147483648
          %v598 = vsel %vm477, %v597, %v596
          %v599 = vsub.s32 4, %v575
          %v600 = vsel %vm477, %v599, %v575
          %v601 = vsel %vm476, %v473, %v598
          %v602 = vsel %vm476, 0, %v600
          %v603 = vmul.f32 %v601, %v601
          %v604 = vmul.f32 %v603, -0.001358992
          %v605 = vadd.f32 %v604, 0.041655596
          %v606 = vmul.f32 %v603, %v605
          %v607 = vadd.f32 %v606, -0.4999988
          %v608 = vmul.f32 %v603, %v607
          %v609 = vadd.f32 1.0, %v608
          %v610 = vmul.f32 %v601, %v601
          %v611 = vmul.f32 %v610, -0.00019511016
          %v612 = vadd.f32 %v611, 0.008332121
          %v613 = vmul.f32 %v610, %v612
          %v614 = vadd.f32 %v613, -0.16666654
          %v615 = vmul.f32 %v610, %v614
          %v616 = vadd.f32 %v615, 1.0
          %v617 = vmul.f32 %v616, %v601
          %vm618 = vweird.f32 %v473
          %v619 = vand.u32 %v602, 3
          %vm620 = vcmp.lt.s32.totalorder %v619, 2
          %vm621 = vcmp.eq.s32.totalorder %v619, 0
          %v622 = vxor.u32 %v617, 2147483648
          %v623 = vsel %vm621, %v609, %v622
          %vm624 = vcmp.eq.s32.totalorder %v619, 2
          %v625 = vxor.u32 %v609, 2147483648
          %v626 = vsel %vm624, %v625, %v617
          %v627 = vsel %vm620, %v623, %v626
          %v628 = vsel %vm618, nan, %v627
          %v629 = vand.u32 2147483647, %v474
          %vm630 = vcmp.le.f32.partialorder %v629, 0.7853982
          %vm631 = vcmp.lt.s32.totalorder %v474, 0
          %v632 = vand.u32 %v474, 2139095040
          %v633 = vshrl.u32 %v632, 23
          %v634 = vsub.s32 %v633, 127
          %v635 = vand.u32 2147483647, %v474
          %v636 = vand.u32 %v635, 8388607
          %v637 = vor.u32 %v636, 8388608
          %v638 = vsub.s32 0, %v637
          %v639 = vadd.s32 %v634, 1
          %vm640 = vcmp.gt.s32.totalorder %v639, 0
          %v641 = vsel %vm640, %v639, 0
          %v642 = vshrl.u32 %v641, 5
          %v643 = vand.u32 %v641, 31
          %v644 = vsub.s32 32, %v643
          %v645 = vshrl.u32 683565275, %v644
          %v646 = vshll.u32 683565275, %v643
          %v647 = vshrl.u32 2475754826, %v644
          %v648 = vor.u32 %v646, %v647
          %v649 = vshll.u32 2475754826, %v643
          %v650 = vshrl.u32 2131351028, %v644
          %v651 = vor.u32 %v649, %v650
          %v652 = vshll.u32 2131351028, %v643
          %v653 = vshrl.u32 2102212464, %v644
          %v654 = vor.u32 %v652, %v653
          %v655 = vshll.u32 2102212464, %v643
          %v656 = vshrl.u32 920167782, %v644
          %v657 = vor.u32 %v655, %v656
          %v658 = vshll.u32 920167782, %v643
          %v659 = vshrl.u32 1326507024, %v644
          %v660 = vor.u32 %v658, %v659
          %vm661 = vcmp.lt.s32.totalorder %v642, 1
          %vm662 = vcmp.lt.s32.totalorder %v642, 2
          %vm663 = vcmp.lt.s32.totalorder %v642, 3
          %vm664 = vcmp.lt.s32.totalorder %v642, 4
          %v665 = vsel %vm661, %v645, %v648
          %v666 = vsel %vm664, %v654, 2102212464
          %v667 = vsel %vm663, %v651, %v666
          %v668 = vsel %vm662, %v665, %v667
          %v669 = vsel %vm661, %v648, %v651
          %v670 = vsel %vm664, %v657, 920167782
          %v671 = vsel %vm663, %v654, %v670
          %v672 = vsel %vm662, %v669, %v671
          %v673 = vsel %vm661, %v651, %v654
          %v674 = vsel %vm664, %v660, 1326507024
          %v675 = vsel %vm663, %v657, %v674
          %v676 = vsel %vm662, %v673, %v675
          %v677 = vshll.u32 %v637, 8
          %v678 = vand.u32 %v677, 65535
          %v679 = vshrl.u32 %v677, 16
          %v680 = vand.u32 %v676, 65535
          %v681 = vshrl.u32 %v676, 16
          %v682 = vmul.u32 %v678, %v680
          %v683 = vmul.u32 %v678, %v681
          %v684 = vmul.u32 %v679, %v680
          %v685 = vmul.u32 %v679, %v681
          %v686 = vshll.u32 %v683, 16
          %v687 = vshrl.u32 %v683, 16
          %v688 = vshll.u32 %v684, 16
          %v689 = vshrl.u32 %v684, 16
          %vm690 = vc.u32 %v682, %v686
          %v691 = vsel %vm690, 1, 0
          %v692 = vadd.s32 %v682, %v686
          %v693 = vadd.s32 %v685, %v691
          %vm694 = vc.u32 %v692, %v688
          %v695 = vsel %vm694, 1, 0
          %v696 = vadd.s32 %v692, %v688
          %v697 = vadd.s32 %v693, %v695
          %v698 = vadd.s32 %v697, %v687
          %v699 = vadd.s32 %v698, %v689
          %v700 = vand.u32 %v677, 65535
          %v701 = vshrl.u32 %v677, 16
          %v702 = vand.u32 %v672, 65535
          %v703 = vshrl.u32 %v672, 16
          %v704 = vmul.u32 %v700, %v702
          %v705 = vmul.u32 %v700, %v703
          %v706 = vmul.u32 %v701, %v702
          %v707 = vmul.u32 %v701, %v703
          %v708 = vshll.u32 %v705, 16
          %v709 = vshrl.u32 %v705, 16
          %v710 = vshll.u32 %v706, 16
          %v711 = vshrl.u32 %v706, 16
          %vm712 = vc.u32 %v704, %v708
          %v713 = vsel %vm712, 1, 0
          %v714 = vadd.s32 %v704, %v708
          %v715 = vadd.s32 %v707, %v713
          %vm716 = vc.u32 %v714, %v710
          %v717 = vsel %vm716, 1, 0
          %v718 = vadd.s32 %v714, %v710
          %v719 = vadd.s32 %v715, %v717
          %v720 = vadd.s32 %v719, %v709
          %v721 = vadd.s32 %v720, %v711
          %v722 = vmul.u32 %v677, %v668
          %v723 = vadd.s32 %v699, %v718
          %vm724 = vc.u32 %v699, %v718
          %v725 = vadd.s32 %v721, 1
          %v726 = vsel %vm724, %v725, %v721
          %v727 = vadd.s32 %v722, %v726
          %v728 = vadd.s32 %v727, 536870912
          %v729 = vshrl.u32 %v728, 30
          %v730 = vshll.u32 %v729, 30
          %v731 = vsub.s32 %v727, %v730
          %vm732 = vcmp.lt.s32.totalorder %v731, 0
          %v733 = vsub.s32 0, %v731
          %v734 = vsel %vm732, %v733, %v731
          %v735 = vclz %v734
          %v736 = vsub.s32 %v735, 2
          %vm737 = vcmp.gt.s32.totalorder 0, %v736
          %v738 = vsel %vm737, 0, %v736
          %v739 = vsub.s32 32, %v738
          %v740 = vshll.u32 %v731, %v738
          %v741 = vshrl.u32 %v723, %v739
          %v742 = vor.u32 %v740, %v741
          %v743 = vsub.s32 4294967266, %v738
          %v744 = vadd.s32 %v743, 127
          %v745 = vshll.u32 %v744, 23
          %v746 = vor.u32 4788187, %v745
          %v747 = vand.u32 2147483647, %v746
          %v749 = vcvt.s32.f32 %v742
          %v750 = vmul.f32 %v749, %v747
          %v751 = vxor.u32 %v750, 2147483648
          %v752 = vsel %vm631, %v751, %v750
          %v753 = vsub.s32 4, %v729
          %v754 = vsel %vm631, %v753, %v729
          %v755 = vsel %vm630, %v474, %v752
          %v756 = vsel %vm630, 0, %v754
          %v757 = vmul.f32 %v755, %v755
          %v758 = vmul.f32 %v757, -0.001358992
          %v759 = vadd.f32 %v758, 0.041655596
          %v760 = vmul.f32 %v757, %v759
          %v761 = vadd.f32 %v760, -0.4999988
          %v762 = vmul.f32 %v757, %v761
          %v763 = vadd.f32 1.0, %v762
          %v764 = vmul.f32 %v755, %v755
          %v765 = vmul.f32 %v764, -0.00019511016
          %v766 = vadd.f32 %v765, 0.008332121
          %v767 = vmul.f32 %v764, %v766
          %v768 = vadd.f32 %v767, -0.16666654
          %v769 = vmul.f32 %v764, %v768
          %v770 = vadd.f32 %v769, 1.0
          %v771 = vmul.f32 %v770, %v755
          %vm772 = vweird.f32 %v474
          %v773 = vand.u32 %v756, 3
          %vm774 = vcmp.lt.s32.totalorder %v773, 2
          %vm775 = vcmp.eq.s32.totalorder %v773, 0
          %v776 = vxor.u32 %v771, 2147483648
          %v777 = vsel %vm775, %v763, %v776
          %vm778 = vcmp.eq.s32.totalorder %v773, 2
          %v779 = vxor.u32 %v763, 2147483648
          %v780 = vsel %vm778, %v779, %v771
          %v781 = vsel %vm774, %v777, %v780
          %v782 = vsel %vm772, nan, %v781
          %v783 = vmul.f32 %v469, %v628
          %v784 = vmul.f32 %v471, %v782
          %vm785 = vcmp.le.s32.totalorder %v450, %v447
          %vm786 = vcmp.le.s32.totalorder %v450, %v448
          %v787 = vsel %vm785, %v783, 0.0
          %v788 = vsel %vm786, %v784, 0.0
          %vm789 = vcmp.eq.s32.totalorder %v447, %v450
          %vm790 = vcmp.eq.s32.totalorder %v448, %v450
          %v791 = vsel %vm789, 1, 0
          %v792 = vsel %vm790, 1, 0
          %v793 = vcvt.s32.f32 %v791
          %v794 = vcvt.s32.f32 %v792
          %v795 = vsub.f32 %v787, %v793
          %v796 = vsub.f32 %v788, %v794
          %vm797 = vcmask 130048
          %798 = vst.msk [vmem:[%s281] sm:$0xff] %vm797, %v795
          %799 = vst.msk [vmem:[%s281 + $0x8] sm:$0xff] %vm797, %v796
        $region72: #{tpu_custom_call.1} parent=39 // pred_fallthru
          _
        %p800 = scmp.ge.s32.totalorder %s27, 4
        %p801 = scmp.lt.s32.totalorder %s27, 5
        %p802 = pnand %p800, %p801
        %p803 = pneg %p802
        // Predicated region
        $region73: #{tpu_custom_call.1} parent=39 // pred_check
          _
        $region74: #{tpu_custom_call.1} parent=39 // pred_check_branch
          %805 = sbr.rel (%p802) target = $region76
        $region75: #{tpu_custom_call.1} parent=39 // pred_region
          %v806 = vlaneseq
          %v807 = vshrl.u32 %v806, 7
          %v808 = vadd.s32 %v807, 8
          %v809 = vstv %s283
          %v810 = vadd.s32 %v807, %v809
          %v811 = vadd.s32 %v808, %v809
          %v812 = vlaneseq
          %v813 = vand.u32 %v812, 127
          %v814 = vsub.s32 %v810, %v813
          %v815 = vsub.s32 %v811, %v813
          %vm816 = vcmp.lt.s32.totalorder %v814, 0
          %v817 = vsub.s32 0, %v814
          %v818 = vsel %vm816, %v817, %v814
          %vm819 = vcmp.lt.s32.totalorder %v815, 0
          %v820 = vsub.s32 0, %v815
          %v821 = vsel %vm819, %v820, %v815
          %vm822 = vcmp.gt.s32.totalorder %v818, 200
          %vm823 = vcmp.gt.s32.totalorder %v821, 200
          %v824 = vsel %vm822, 0, %v818
          %v825 = vsel %vm823, 0, %v821
          %v826 = vcvt.s32.f32 %v824
          %v827 = vcvt.s32.f32 %v825
          %v828 = vstv %s284
          %v829 = vmul.f32 %v826, %v828
          %v830 = vmul.f32 %v827, %v828
          %v831 = vmul.f32 %v829, 1.442695
          %v832 = vpow.pop %v831
          %v833 = vmul.f32 %v830, 1.442695
          %v834 = vpow.pop %v833
          %v835 = vstv %s286
          %v836 = vmul.f32 %v835, %v826
          %v837 = vmul.f32 %v835, %v827
          %v838 = vand.u32 2147483647, %v836
          %vm839 = vcmp.le.f32.partialorder %v838, 0.7853982
          %vm840 = vcmp.lt.s32.totalorder %v836, 0
          %v841 = vand.u32 %v836, 2139095040
          %v842 = vshrl.u32 %v841, 23
          %v843 = vsub.s32 %v842, 127
          %v844 = vand.u32 2147483647, %v836
          %v845 = vand.u32 %v844, 8388607
          %v846 = vor.u32 %v845, 8388608
          %v847 = vsub.s32 0, %v846
          %v848 = vadd.s32 %v843, 1
          %vm849 = vcmp.gt.s32.totalorder %v848, 0
          %v850 = vsel %vm849, %v848, 0
          %v851 = vshrl.u32 %v850, 5
          %v852 = vand.u32 %v850, 31
          %v853 = vsub.s32 32, %v852
          %v854 = vshrl.u32 683565275, %v853
          %v855 = vshll.u32 683565275, %v852
          %v856 = vshrl.u32 2475754826, %v853
          %v857 = vor.u32 %v855, %v856
          %v858 = vshll.u32 2475754826, %v852
          %v859 = vshrl.u32 2131351028, %v853
          %v860 = vor.u32 %v858, %v859
          %v861 = vshll.u32 2131351028, %v852
          %v862 = vshrl.u32 2102212464, %v853
          %v863 = vor.u32 %v861, %v862
          %v864 = vshll.u32 2102212464, %v852
          %v865 = vshrl.u32 920167782, %v853
          %v866 = vor.u32 %v864, %v865
          %v867 = vshll.u32 920167782, %v852
          %v868 = vshrl.u32 1326507024, %v853
          %v869 = vor.u32 %v867, %v868
          %vm870 = vcmp.lt.s32.totalorder %v851, 1
          %vm871 = vcmp.lt.s32.totalorder %v851, 2
          %vm872 = vcmp.lt.s32.totalorder %v851, 3
          %vm873 = vcmp.lt.s32.totalorder %v851, 4
          %v874 = vsel %vm870, %v854, %v857
          %v875 = vsel %vm873, %v863, 2102212464
          %v876 = vsel %vm872, %v860, %v875
          %v877 = vsel %vm871, %v874, %v876
          %v878 = vsel %vm870, %v857, %v860
          %v879 = vsel %vm873, %v866, 920167782
          %v880 = vsel %vm872, %v863, %v879
          %v881 = vsel %vm871, %v878, %v880
          %v882 = vsel %vm870, %v860, %v863
          %v883 = vsel %vm873, %v869, 1326507024
          %v884 = vsel %vm872, %v866, %v883
          %v885 = vsel %vm871, %v882, %v884
          %v886 = vshll.u32 %v846, 8
          %v887 = vand.u32 %v886, 65535
          %v888 = vshrl.u32 %v886, 16
          %v889 = vand.u32 %v885, 65535
          %v890 = vshrl.u32 %v885, 16
          %v891 = vmul.u32 %v887, %v889
          %v892 = vmul.u32 %v887, %v890
          %v893 = vmul.u32 %v888, %v889
          %v894 = vmul.u32 %v888, %v890
          %v895 = vshll.u32 %v892, 16
          %v896 = vshrl.u32 %v892, 16
          %v897 = vshll.u32 %v893, 16
          %v898 = vshrl.u32 %v893, 16
          %vm899 = vc.u32 %v891, %v895
          %v900 = vsel %vm899, 1, 0
          %v901 = vadd.s32 %v891, %v895
          %v902 = vadd.s32 %v894, %v900
          %vm903 = vc.u32 %v901, %v897
          %v904 = vsel %vm903, 1, 0
          %v905 = vadd.s32 %v901, %v897
          %v906 = vadd.s32 %v902, %v904
          %v907 = vadd.s32 %v906, %v896
          %v908 = vadd.s32 %v907, %v898
          %v909 = vand.u32 %v886, 65535
          %v910 = vshrl.u32 %v886, 16
          %v911 = vand.u32 %v881, 65535
          %v912 = vshrl.u32 %v881, 16
          %v913 = vmul.u32 %v909, %v911
          %v914 = vmul.u32 %v909, %v912
          %v915 = vmul.u32 %v910, %v911
          %v916 = vmul.u32 %v910, %v912
          %v917 = vshll.u32 %v914, 16
          %v918 = vshrl.u32 %v914, 16
          %v919 = vshll.u32 %v915, 16
          %v920 = vshrl.u32 %v915, 16
          %vm921 = vc.u32 %v913, %v917
          %v922 = vsel %vm921, 1, 0
          %v923 = vadd.s32 %v913, %v917
          %v924 = vadd.s32 %v916, %v922
          %vm925 = vc.u32 %v923, %v919
          %v926 = vsel %vm925, 1, 0
          %v927 = vadd.s32 %v923, %v919
          %v928 = vadd.s32 %v924, %v926
          %v929 = vadd.s32 %v928, %v918
          %v930 = vadd.s32 %v929, %v920
          %v931 = vmul.u32 %v886, %v877
          %v932 = vadd.s32 %v908, %v927
          %vm933 = vc.u32 %v908, %v927
          %v934 = vadd.s32 %v930, 1
          %v935 = vsel %vm933, %v934, %v930
          %v936 = vadd.s32 %v931, %v935
          %v937 = vadd.s32 %v936, 536870912
          %v938 = vshrl.u32 %v937, 30
          %v939 = vshll.u32 %v938, 30
          %v940 = vsub.s32 %v936, %v939
          %vm941 = vcmp.lt.s32.totalorder %v940, 0
          %v942 = vsub.s32 0, %v940
          %v943 = vsel %vm941, %v942, %v940
          %v944 = vclz %v943
          %v945 = vsub.s32 %v944, 2
          %vm946 = vcmp.gt.s32.totalorder 0, %v945
          %v947 = vsel %vm946, 0, %v945
          %v948 = vsub.s32 32, %v947
          %v949 = vshll.u32 %v940, %v947
          %v950 = vshrl.u32 %v932, %v948
          %v951 = vor.u32 %v949, %v950
          %v952 = vsub.s32 4294967266, %v947
          %v953 = vadd.s32 %v952, 127
          %v954 = vshll.u32 %v953, 23
          %v955 = vor.u32 4788187, %v954
          %v956 = vand.u32 2147483647, %v955
          %v958 = vcvt.s32.f32 %v951
          %v959 = vmul.f32 %v958, %v956
          %v960 = vxor.u32 %v959, 2147483648
          %v961 = vsel %vm840, %v960, %v959
          %v962 = vsub.s32 4, %v938
          %v963 = vsel %vm840, %v962, %v938
          %v964 = vsel %vm839, %v836, %v961
          %v965 = vsel %vm839, 0, %v963
          %v966 = vmul.f32 %v964, %v964
          %v967 = vmul.f32 %v966, -0.001358992
          %v968 = vadd.f32 %v967, 0.041655596
          %v969 = vmul.f32 %v966, %v968
          %v970 = vadd.f32 %v969, -0.4999988
          %v971 = vmul.f32 %v966, %v970
          %v972 = vadd.f32 1.0, %v971
          %v973 = vmul.f32 %v964, %v964
          %v974 = vmul.f32 %v973, -0.00019511016
          %v975 = vadd.f32 %v974, 0.008332121
          %v976 = vmul.f32 %v973, %v975
          %v977 = vadd.f32 %v976, -0.16666654
          %v978 = vmul.f32 %v973, %v977
          %v979 = vadd.f32 %v978, 1.0
          %v980 = vmul.f32 %v979, %v964
          %vm981 = vweird.f32 %v836
          %v982 = vadd.s32 %v965, 3
          %v983 = vand.u32 %v982, 3
          %vm984 = vcmp.lt.s32.totalorder %v983, 2
          %vm985 = vcmp.eq.s32.totalorder %v983, 0
          %v986 = vxor.u32 %v980, 2147483648
          %v987 = vsel %vm985, %v972, %v986
          %vm988 = vcmp.eq.s32.totalorder %v983, 2
          %v989 = vxor.u32 %v972, 2147483648
          %v990 = vsel %vm988, %v989, %v980
          %v991 = vsel %vm984, %v987, %v990
          %v992 = vsel %vm981, nan, %v991
          %v993 = vand.u32 2147483647, %v837
          %vm994 = vcmp.le.f32.partialorder %v993, 0.7853982
          %vm995 = vcmp.lt.s32.totalorder %v837, 0
          %v996 = vand.u32 %v837, 2139095040
          %v997 = vshrl.u32 %v996, 23
          %v998 = vsub.s32 %v997, 127
          %v999 = vand.u32 2147483647, %v837
          %v1000 = vand.u32 %v999, 8388607
          %v1001 = vor.u32 %v1000, 8388608
          %v1002 = vsub.s32 0, %v1001
          %v1003 = vadd.s32 %v998, 1
          %vm1004 = vcmp.gt.s32.totalorder %v1003, 0
          %v1005 = vsel %vm1004, %v1003, 0
          %v1006 = vshrl.u32 %v1005, 5
          %v1007 = vand.u32 %v1005, 31
          %v1008 = vsub.s32 32, %v1007
          %v1009 = vshrl.u32 683565275, %v1008
          %v1010 = vshll.u32 683565275, %v1007
          %v1011 = vshrl.u32 2475754826, %v1008
          %v1012 = vor.u32 %v1010, %v1011
          %v1013 = vshll.u32 2475754826, %v1007
          %v1014 = vshrl.u32 2131351028, %v1008
          %v1015 = vor.u32 %v1013, %v1014
          %v1016 = vshll.u32 2131351028, %v1007
          %v1017 = vshrl.u32 2102212464, %v1008
          %v1018 = vor.u32 %v1016, %v1017
          %v1019 = vshll.u32 2102212464, %v1007
          %v1020 = vshrl.u32 920167782, %v1008
          %v1021 = vor.u32 %v1019, %v1020
          %v1022 = vshll.u32 920167782, %v1007
          %v1023 = vshrl.u32 1326507024, %v1008
          %v1024 = vor.u32 %v1022, %v1023
          %vm1025 = vcmp.lt.s32.totalorder %v1006, 1
          %vm1026 = vcmp.lt.s32.totalorder %v1006, 2
          %vm1027 = vcmp.lt.s32.totalorder %v1006, 3
          %vm1028 = vcmp.lt.s32.totalorder %v1006, 4
          %v1029 = vsel %vm1025, %v1009, %v1012
          %v1030 = vsel %vm1028, %v1018, 2102212464
          %v1031 = vsel %vm1027, %v1015, %v1030
          %v1032 = vsel %vm1026, %v1029, %v1031
          %v1033 = vsel %vm1025, %v1012, %v1015
          %v1034 = vsel %vm1028, %v1021, 920167782
          %v1035 = vsel %vm1027, %v1018, %v1034
          %v1036 = vsel %vm1026, %v1033, %v1035
          %v1037 = vsel %vm1025, %v1015, %v1018
          %v1038 = vsel %vm1028, %v1024, 1326507024
          %v1039 = vsel %vm1027, %v1021, %v1038
          %v1040 = vsel %vm1026, %v1037, %v1039
          %v1041 = vshll.u32 %v1001, 8
          %v1042 = vand.u32 %v1041, 65535
          %v1043 = vshrl.u32 %v1041, 16
          %v1044 = vand.u32 %v1040, 65535
          %v1045 = vshrl.u32 %v1040, 16
          %v1046 = vmul.u32 %v1042, %v1044
          %v1047 = vmul.u32 %v1042, %v1045
          %v1048 = vmul.u32 %v1043, %v1044
          %v1049 = vmul.u32 %v1043, %v1045
          %v1050 = vshll.u32 %v1047, 16
          %v1051 = vshrl.u32 %v1047, 16
          %v1052 = vshll.u32 %v1048, 16
          %v1053 = vshrl.u32 %v1048, 16
          %vm1054 = vc.u32 %v1046, %v1050
          %v1055 = vsel %vm1054, 1, 0
          %v1056 = vadd.s32 %v1046, %v1050
          %v1057 = vadd.s32 %v1049, %v1055
          %vm1058 = vc.u32 %v1056, %v1052
          %v1059 = vsel %vm1058, 1, 0
          %v1060 = vadd.s32 %v1056, %v1052
          %v1061 = vadd.s32 %v1057, %v1059
          %v1062 = vadd.s32 %v1061, %v1051
          %v1063 = vadd.s32 %v1062, %v1053
          %v1064 = vand.u32 %v1041, 65535
          %v1065 = vshrl.u32 %v1041, 16
          %v1066 = vand.u32 %v1036, 65535
          %v1067 = vshrl.u32 %v1036, 16
          %v1068 = vmul.u32 %v1064, %v1066
          %v1069 = vmul.u32 %v1064, %v1067
          %v1070 = vmul.u32 %v1065, %v1066
          %v1071 = vmul.u32 %v1065, %v1067
          %v1072 = vshll.u32 %v1069, 16
          %v1073 = vshrl.u32 %v1069, 16
          %v1074 = vshll.u32 %v1070, 16
          %v1075 = vshrl.u32 %v1070, 16
          %vm1076 = vc.u32 %v1068, %v1072
          %v1077 = vsel %vm1076, 1, 0
          %v1078 = vadd.s32 %v1068, %v1072
          %v1079 = vadd.s32 %v1071, %v1077
          %vm1080 = vc.u32 %v1078, %v1074
          %v1081 = vsel %vm1080, 1, 0
          %v1082 = vadd.s32 %v1078, %v1074
          %v1083 = vadd.s32 %v1079, %v1081
          %v1084 = vadd.s32 %v1083, %v1073
          %v1085 = vadd.s32 %v1084, %v1075
          %v1086 = vmul.u32 %v1041, %v1032
          %v1087 = vadd.s32 %v1063, %v1082
          %vm1088 = vc.u32 %v1063, %v1082
          %v1089 = vadd.s32 %v1085, 1
          %v1090 = vsel %vm1088, %v1089, %v1085
          %v1091 = vadd.s32 %v1086, %v1090
          %v1092 = vadd.s32 %v1091, 536870912
          %v1093 = vshrl.u32 %v1092, 30
          %v1094 = vshll.u32 %v1093, 30
          %v1095 = vsub.s32 %v1091, %v1094
          %vm1096 = vcmp.lt.s32.totalorder %v1095, 0
          %v1097 = vsub.s32 0, %v1095
          %v1098 = vsel %vm1096, %v1097, %v1095
          %v1099 = vclz %v1098
          %v1100 = vsub.s32 %v1099, 2
          %vm1101 = vcmp.gt.s32.totalorder 0, %v1100
          %v1102 = vsel %vm1101, 0, %v1100
          %v1103 = vsub.s32 32, %v1102
          %v1104 = vshll.u32 %v1095, %v1102
          %v1105 = vshrl.u32 %v1087, %v1103
          %v1106 = vor.u32 %v1104, %v1105
          %v1107 = vsub.s32 4294967266, %v1102
          %v1108 = vadd.s32 %v1107, 127
          %v1109 = vshll.u32 %v1108, 23
          %v1110 = vor.u32 4788187, %v1109
          %v1111 = vand.u32 2147483647, %v1110
          %v1113 = vcvt.s32.f32 %v1106
          %v1114 = vmul.f32 %v1113, %v1111
          %v1115 = vxor.u32 %v1114, 2147483648
          %v1116 = vsel %vm995, %v1115, %v1114
          %v1117 = vsub.s32 4, %v1093
          %v1118 = vsel %vm995, %v1117, %v1093
          %v1119 = vsel %vm994, %v837, %v1116
          %v1120 = vsel %vm994, 0, %v1118
          %v1121 = vmul.f32 %v1119, %v1119
          %v1122 = vmul.f32 %v1121, -0.001358992
          %v1123 = vadd.f32 %v1122, 0.041655596
          %v1124 = vmul.f32 %v1121, %v1123
          %v1125 = vadd.f32 %v1124, -0.4999988
          %v1126 = vmul.f32 %v1121, %v1125
          %v1127 = vadd.f32 1.0, %v1126
          %v1128 = vmul.f32 %v1119, %v1119
          %v1129 = vmul.f32 %v1128, -0.00019511016
          %v1130 = vadd.f32 %v1129, 0.008332121
          %v1131 = vmul.f32 %v1128, %v1130
          %v1132 = vadd.f32 %v1131, -0.16666654
          %v1133 = vmul.f32 %v1128, %v1132
          %v1134 = vadd.f32 %v1133, 1.0
          %v1135 = vmul.f32 %v1134, %v1119
          %vm1136 = vweird.f32 %v837
          %v1137 = vadd.s32 %v1120, 3
          %v1138 = vand.u32 %v1137, 3
          %vm1139 = vcmp.lt.s32.totalorder %v1138, 2
          %vm1140 = vcmp.eq.s32.totalorder %v1138, 0
          %v1141 = vxor.u32 %v1135, 2147483648
          %v1142 = vsel %vm1140, %v1127, %v1141
          %vm1143 = vcmp.eq.s32.totalorder %v1138, 2
          %v1144 = vxor.u32 %v1127, 2147483648
          %v1145 = vsel %vm1143, %v1144, %v1135
          %v1146 = vsel %vm1139, %v1142, %v1145
          %v1147 = vsel %vm1136, nan, %v1146
          %v1148 = vmul.f32 %v832, %v992
          %v1149 = vmul.f32 %v834, %v1147
          %vm1150 = vcmp.le.s32.totalorder %v813, %v810
          %vm1151 = vcmp.le.s32.totalorder %v813, %v811
          %v1152 = vsel %vm1150, %v1148, 0.0
          %v1153 = vsel %vm1151, %v1149, 0.0
          %vm1154 = vcmp.eq.s32.totalorder %v810, %v813
          %vm1155 = vcmp.eq.s32.totalorder %v811, %v813
          %v1156 = vsel %vm1154, 1, 0
          %v1157 = vsel %vm1155, 1, 0
          %v1158 = vcvt.s32.f32 %v1156
          %v1159 = vcvt.s32.f32 %v1157
          %v1160 = vsub.f32 %v1152, %v1158
          %v1161 = vsub.f32 %v1153, %v1159
          %vm1162 = vcmask 130048
          %1163 = vst.msk [vmem:[%s281] sm:$0xff] %vm1162, %v1160
          %1164 = vst.msk [vmem:[%s281 + $0x8] sm:$0xff] %vm1162, %v1161
        $region76: #{tpu_custom_call.1} parent=39 // pred_fallthru
          _
        %p1165 = scmp.ge.s32.totalorder %s27, 5
        %p1166 = scmp.lt.s32.totalorder %s27, 7
        %p1167 = pnand %p1165, %p1166
        %p1168 = pneg %p1167
        // Predicated region
        $region77: #{tpu_custom_call.1} parent=39 // pred_check
          _
        $region78: #{tpu_custom_call.1} parent=39 // pred_check_branch
          %1170 = sbr.rel (%p1167) target = $region80
        $region79: #{tpu_custom_call.1} parent=39 // pred_region
          %v1171 = vlaneseq
          %v1172 = vshrl.u32 %v1171, 7
          %v1173 = vadd.s32 %v1172, 8
          %v1174 = vstv %s283
          %v1175 = vadd.s32 %v1172, %v1174
          %v1176 = vadd.s32 %v1173, %v1174
          %v1177 = vlaneseq
          %v1178 = vand.u32 %v1177, 127
          %v1179 = vcvt.s32.f32 %v1175
          %v1180 = vcvt.s32.f32 %v1176
          %v1181 = vcvt.s32.f32 %v1178
          %v1182 = vadd.f32 %v1179, 0.5
          %v1183 = vadd.f32 %v1180, 0.5
          %v1184 = vstv %s288
          %v1185 = vmul.f32 %v1182, %v1184
          %v1186 = vmul.f32 %v1183, %v1184
          %v1187 = vfloor.f32 %v1185
          %v1188 = vfloor.f32 %v1186
          %v1189 = vadd.f32 %v1181, 0.5
          %v1190 = vmul.f32 %v1189, %v1184
          %v1191 = vfloor.f32 %v1190
          %v1192 = vsub.f32 %v1187, %v1191
          %v1193 = vsub.f32 %v1188, %v1191
          %v1194 = vand.u32 2147483647, %v1192
          %v1195 = vand.u32 2147483647, %v1193
          %vm1196 = vcmp.gt.f32.partialorder %v1194, 200.0
          %vm1197 = vcmp.gt.f32.partialorder %v1195, 200.0
          %v1198 = vsel %vm1196, 0.0, %v1194
          %v1199 = vsel %vm1197, 0.0, %v1195
          %v1200 = vstv %s287
          %v1201 = vmul.f32 %v1200, %v1187
          %v1202 = vmul.f32 %v1200, %v1188
          %v1203 = vsub.f32 %v1179, %v1201
          %v1204 = vsub.f32 %v1180, %v1202
          %v1205 = vmul.f32 %v1200, %v1191
          %v1206 = vsub.f32 %v1181, %v1205
          %vm1207 = vcmp.eq.f32.partialorder %v1203, %v1206
          %vm1208 = vcmp.eq.f32.partialorder %v1204, %v1206
          %v1209 = vsub.s32 %v1175, %v1178
          %v1210 = vsub.s32 %v1176, %v1178
          %vm1211 = vcmp.lt.s32.totalorder %v1209, 0
          %v1212 = vsub.s32 0, %v1209
          %v1213 = vsel %vm1211, %v1212, %v1209
          %vm1214 = vcmp.lt.s32.totalorder %v1210, 0
          %v1215 = vsub.s32 0, %v1210
          %v1216 = vsel %vm1214, %v1215, %v1210
          %vm1217 = vcmp.gt.s32.totalorder %v1213, 200
          %vm1218 = vcmp.gt.s32.totalorder %v1216, 200
          %v1219 = vsel %vm1217, 0, %v1213
          %v1220 = vsel %vm1218, 0, %v1216
          %v1221 = vcvt.s32.f32 %v1219
          %v1222 = vcvt.s32.f32 %v1220
          %v1223 = vstv %s286
          %v1224 = vmul.f32 %v1223, %v1198
          %v1225 = vmul.f32 %v1223, %v1199
          %v1226 = vand.u32 2147483647, %v1224
          %vm1227 = vcmp.le.f32.partialorder %v1226, 0.7853982
          %vm1228 = vcmp.lt.s32.totalorder %v1224, 0
          %v1229 = vand.u32 %v1224, 2139095040
          %v1230 = vshrl.u32 %v1229, 23
          %v1231 = vsub.s32 %v1230, 127
          %v1232 = vand.u32 2147483647, %v1224
          %v1233 = vand.u32 %v1232, 8388607
          %v1234 = vor.u32 %v1233, 8388608
          %v1235 = vsub.s32 0, %v1234
          %v1236 = vadd.s32 %v1231, 1
          %vm1237 = vcmp.gt.s32.totalorder %v1236, 0
          %v1238 = vsel %vm1237, %v1236, 0
          %v1239 = vshrl.u32 %v1238, 5
          %v1240 = vand.u32 %v1238, 31
          %v1241 = vsub.s32 32, %v1240
          %v1242 = vshrl.u32 683565275, %v1241
          %v1243 = vshll.u32 683565275, %v1240
          %v1244 = vshrl.u32 2475754826, %v1241
          %v1245 = vor.u32 %v1243, %v1244
          %v1246 = vshll.u32 2475754826, %v1240
          %v1247 = vshrl.u32 2131351028, %v1241
          %v1248 = vor.u32 %v1246, %v1247
          %v1249 = vshll.u32 2131351028, %v1240
          %v1250 = vshrl.u32 2102212464, %v1241
          %v1251 = vor.u32 %v1249, %v1250
          %v1252 = vshll.u32 2102212464, %v1240
          %v1253 = vshrl.u32 920167782, %v1241
          %v1254 = vor.u32 %v1252, %v1253
          %v1255 = vshll.u32 920167782, %v1240
          %v1256 = vshrl.u32 1326507024, %v1241
          %v1257 = vor.u32 %v1255, %v1256
          %vm1258 = vcmp.lt.s32.totalorder %v1239, 1
          %vm1259 = vcmp.lt.s32.totalorder %v1239, 2
          %vm1260 = vcmp.lt.s32.totalorder %v1239, 3
          %vm1261 = vcmp.lt.s32.totalorder %v1239, 4
          %v1262 = vsel %vm1258, %v1242, %v1245
          %v1263 = vsel %vm1261, %v1251, 2102212464
          %v1264 = vsel %vm1260, %v1248, %v1263
          %v1265 = vsel %vm1259, %v1262, %v1264
          %v1266 = vsel %vm1258, %v1245, %v1248
          %v1267 = vsel %vm1261, %v1254, 920167782
          %v1268 = vsel %vm1260, %v1251, %v1267
          %v1269 = vsel %vm1259, %v1266, %v1268
          %v1270 = vsel %vm1258, %v1248, %v1251
          %v1271 = vsel %vm1261, %v1257, 1326507024
          %v1272 = vsel %vm1260, %v1254, %v1271
          %v1273 = vsel %vm1259, %v1270, %v1272
          %v1274 = vshll.u32 %v1234, 8
          %v1275 = vand.u32 %v1274, 65535
          %v1276 = vshrl.u32 %v1274, 16
          %v1277 = vand.u32 %v1273, 65535
          %v1278 = vshrl.u32 %v1273, 16
          %v1279 = vmul.u32 %v1275, %v1277
          %v1280 = vmul.u32 %v1275, %v1278
          %v1281 = vmul.u32 %v1276, %v1277
          %v1282 = vmul.u32 %v1276, %v1278
          %v1283 = vshll.u32 %v1280, 16
          %v1284 = vshrl.u32 %v1280, 16
          %v1285 = vshll.u32 %v1281, 16
          %v1286 = vshrl.u32 %v1281, 16
          %vm1287 = vc.u32 %v1279, %v1283
          %v1288 = vsel %vm1287, 1, 0
          %v1289 = vadd.s32 %v1279, %v1283
          %v1290 = vadd.s32 %v1282, %v1288
          %vm1291 = vc.u32 %v1289, %v1285
          %v1292 = vsel %vm1291, 1, 0
          %v1293 = vadd.s32 %v1289, %v1285
          %v1294 = vadd.s32 %v1290, %v1292
          %v1295 = vadd.s32 %v1294, %v1284
          %v1296 = vadd.s32 %v1295, %v1286
          %v1297 = vand.u32 %v1274, 65535
          %v1298 = vshrl.u32 %v1274, 16
          %v1299 = vand.u32 %v1269, 65535
          %v1300 = vshrl.u32 %v1269, 16
          %v1301 = vmul.u32 %v1297, %v1299
          %v1302 = vmul.u32 %v1297, %v1300
          %v1303 = vmul.u32 %v1298, %v1299
          %v1304 = vmul.u32 %v1298, %v1300
          %v1305 = vshll.u32 %v1302, 16
          %v1306 = vshrl.u32 %v1302, 16
          %v1307 = vshll.u32 %v1303, 16
          %v1308 = vshrl.u32 %v1303, 16
          %vm1309 = vc.u32 %v1301, %v1305
          %v1310 = vsel %vm1309, 1, 0
          %v1311 = vadd.s32 %v1301, %v1305
          %v1312 = vadd.s32 %v1304, %v1310
          %vm1313 = vc.u32 %v1311, %v1307
          %v1314 = vsel %vm1313, 1, 0
          %v1315 = vadd.s32 %v1311, %v1307
          %v1316 = vadd.s32 %v1312, %v1314
          %v1317 = vadd.s32 %v1316, %v1306
          %v1318 = vadd.s32 %v1317, %v1308
          %v1319 = vmul.u32 %v1274, %v1265
          %v1320 = vadd.s32 %v1296, %v1315
          %vm1321 = vc.u32 %v1296, %v1315
          %v1322 = vadd.s32 %v1318, 1
          %v1323 = vsel %vm1321, %v1322, %v1318
          %v1324 = vadd.s32 %v1319, %v1323
          %v1325 = vadd.s32 %v1324, 536870912
          %v1326 = vshrl.u32 %v1325, 30
          %v1327 = vshll.u32 %v1326, 30
          %v1328 = vsub.s32 %v1324, %v1327
          %vm1329 = vcmp.lt.s32.totalorder %v1328, 0
          %v1330 = vsub.s32 0, %v1328
          %v1331 = vsel %vm1329, %v1330, %v1328
          %v1332 = vclz %v1331
          %v1333 = vsub.s32 %v1332, 2
          %vm1334 = vcmp.gt.s32.totalorder 0, %v1333
          %v1335 = vsel %vm1334, 0, %v1333
          %v1336 = vsub.s32 32, %v1335
          %v1337 = vshll.u32 %v1328, %v1335
          %v1338 = vshrl.u32 %v1320, %v1336
          %v1339 = vor.u32 %v1337, %v1338
          %v1340 = vsub.s32 4294967266, %v1335
          %v1341 = vadd.s32 %v1340, 127
          %v1342 = vshll.u32 %v1341, 23
          %v1343 = vor.u32 4788187, %v1342
          %v1344 = vand.u32 2147483647, %v1343
          %v1346 = vcvt.s32.f32 %v1339
          %v1347 = vmul.f32 %v1346, %v1344
          %v1348 = vxor.u32 %v1347, 2147483648
          %v1349 = vsel %vm1228, %v1348, %v1347
          %v1350 = vsub.s32 4, %v1326
          %v1351 = vsel %vm1228, %v1350, %v1326
          %v1352 = vsel %vm1227, %v1224, %v1349
          %v1353 = vsel %vm1227, 0, %v1351
          %v1354 = vmul.f32 %v1352, %v1352
          %v1355 = vmul.f32 %v1354, -0.001358992
          %v1356 = vadd.f32 %v1355, 0.041655596
          %v1357 = vmul.f32 %v1354, %v1356
          %v1358 = vadd.f32 %v1357, -0.4999988
          %v1359 = vmul.f32 %v1354, %v1358
          %v1360 = vadd.f32 1.0, %v1359
          %v1361 = vmul.f32 %v1352, %v1352
          %v1362 = vmul.f32 %v1361, -0.00019511016
          %v1363 = vadd.f32 %v1362, 0.008332121
          %v1364 = vmul.f32 %v1361, %v1363
          %v1365 = vadd.f32 %v1364, -0.16666654
          %v1366 = vmul.f32 %v1361, %v1365
          %v1367 = vadd.f32 %v1366, 1.0
          %v1368 = vmul.f32 %v1367, %v1352
          %vm1369 = vweird.f32 %v1224
          %v1370 = vand.u32 %v1353, 3
          %vm1371 = vcmp.lt.s32.totalorder %v1370, 2
          %vm1372 = vcmp.eq.s32.totalorder %v1370, 0
          %v1373 = vxor.u32 %v1368, 2147483648
          %v1374 = vsel %vm1372, %v1360, %v1373
          %vm1375 = vcmp.eq.s32.totalorder %v1370, 2
          %v1376 = vxor.u32 %v1360, 2147483648
          %v1377 = vsel %vm1375, %v1376, %v1368
          %v1378 = vsel %vm1371, %v1374, %v1377
          %v1379 = vsel %vm1369, nan, %v1378
          %v1380 = vand.u32 2147483647, %v1225
          %vm1381 = vcmp.le.f32.partialorder %v1380, 0.7853982
          %vm1382 = vcmp.lt.s32.totalorder %v1225, 0
          %v1383 = vand.u32 %v1225, 2139095040
          %v1384 = vshrl.u32 %v1383, 23
          %v1385 = vsub.s32 %v1384, 127
          %v1386 = vand.u32 2147483647, %v1225
          %v1387 = vand.u32 %v1386, 8388607
          %v1388 = vor.u32 %v1387, 8388608
          %v1389 = vsub.s32 0, %v1388
          %v1390 = vadd.s32 %v1385, 1
          %vm1391 = vcmp.gt.s32.totalorder %v1390, 0
          %v1392 = vsel %vm1391, %v1390, 0
          %v1393 = vshrl.u32 %v1392, 5
          %v1394 = vand.u32 %v1392, 31
          %v1395 = vsub.s32 32, %v1394
          %v1396 = vshrl.u32 683565275, %v1395
          %v1397 = vshll.u32 683565275, %v1394
          %v1398 = vshrl.u32 2475754826, %v1395
          %v1399 = vor.u32 %v1397, %v1398
          %v1400 = vshll.u32 2475754826, %v1394
          %v1401 = vshrl.u32 2131351028, %v1395
          %v1402 = vor.u32 %v1400, %v1401
          %v1403 = vshll.u32 2131351028, %v1394
          %v1404 = vshrl.u32 2102212464, %v1395
          %v1405 = vor.u32 %v1403, %v1404
          %v1406 = vshll.u32 2102212464, %v1394
          %v1407 = vshrl.u32 920167782, %v1395
          %v1408 = vor.u32 %v1406, %v1407
          %v1409 = vshll.u32 920167782, %v1394
          %v1410 = vshrl.u32 1326507024, %v1395
          %v1411 = vor.u32 %v1409, %v1410
          %vm1412 = vcmp.lt.s32.totalorder %v1393, 1
          %vm1413 = vcmp.lt.s32.totalorder %v1393, 2
          %vm1414 = vcmp.lt.s32.totalorder %v1393, 3
          %vm1415 = vcmp.lt.s32.totalorder %v1393, 4
          %v1416 = vsel %vm1412, %v1396, %v1399
          %v1417 = vsel %vm1415, %v1405, 2102212464
          %v1418 = vsel %vm1414, %v1402, %v1417
          %v1419 = vsel %vm1413, %v1416, %v1418
          %v1420 = vsel %vm1412, %v1399, %v1402
          %v1421 = vsel %vm1415, %v1408, 920167782
          %v1422 = vsel %vm1414, %v1405, %v1421
          %v1423 = vsel %vm1413, %v1420, %v1422
          %v1424 = vsel %vm1412, %v1402, %v1405
          %v1425 = vsel %vm1415, %v1411, 1326507024
          %v1426 = vsel %vm1414, %v1408, %v1425
          %v1427 = vsel %vm1413, %v1424, %v1426
          %v1428 = vshll.u32 %v1388, 8
          %v1429 = vand.u32 %v1428, 65535
          %v1430 = vshrl.u32 %v1428, 16
          %v1431 = vand.u32 %v1427, 65535
          %v1432 = vshrl.u32 %v1427, 16
          %v1433 = vmul.u32 %v1429, %v1431
          %v1434 = vmul.u32 %v1429, %v1432
          %v1435 = vmul.u32 %v1430, %v1431
          %v1436 = vmul.u32 %v1430, %v1432
          %v1437 = vshll.u32 %v1434, 16
          %v1438 = vshrl.u32 %v1434, 16
          %v1439 = vshll.u32 %v1435, 16
          %v1440 = vshrl.u32 %v1435, 16
          %vm1441 = vc.u32 %v1433, %v1437
          %v1442 = vsel %vm1441, 1, 0
          %v1443 = vadd.s32 %v1433, %v1437
          %v1444 = vadd.s32 %v1436, %v1442
          %vm1445 = vc.u32 %v1443, %v1439
          %v1446 = vsel %vm1445, 1, 0
          %v1447 = vadd.s32 %v1443, %v1439
          %v1448 = vadd.s32 %v1444, %v1446
          %v1449 = vadd.s32 %v1448, %v1438
          %v1450 = vadd.s32 %v1449, %v1440
          %v1451 = vand.u32 %v1428, 65535
          %v1452 = vshrl.u32 %v1428, 16
          %v1453 = vand.u32 %v1423, 65535
          %v1454 = vshrl.u32 %v1423, 16
          %v1455 = vmul.u32 %v1451, %v1453
          %v1456 = vmul.u32 %v1451, %v1454
          %v1457 = vmul.u32 %v1452, %v1453
          %v1458 = vmul.u32 %v1452, %v1454
          %v1459 = vshll.u32 %v1456, 16
          %v1460 = vshrl.u32 %v1456, 16
          %v1461 = vshll.u32 %v1457, 16
          %v1462 = vshrl.u32 %v1457, 16
          %vm1463 = vc.u32 %v1455, %v1459
          %v1464 = vsel %vm1463, 1, 0
          %v1465 = vadd.s32 %v1455, %v1459
          %v1466 = vadd.s32 %v1458, %v1464
          %vm1467 = vc.u32 %v1465, %v1461
          %v1468 = vsel %vm1467, 1, 0
          %v1469 = vadd.s32 %v1465, %v1461
          %v1470 = vadd.s32 %v1466, %v1468
          %v1471 = vadd.s32 %v1470, %v1460
          %v1472 = vadd.s32 %v1471, %v1462
          %v1473 = vmul.u32 %v1428, %v1419
          %v1474 = vadd.s32 %v1450, %v1469
          %vm1475 = vc.u32 %v1450, %v1469
          %v1476 = vadd.s32 %v1472, 1
          %v1477 = vsel %vm1475, %v1476, %v1472
          %v1478 = vadd.s32 %v1473, %v1477
          %v1479 = vadd.s32 %v1478, 536870912
          %v1480 = vshrl.u32 %v1479, 30
          %v1481 = vshll.u32 %v1480, 30
          %v1482 = vsub.s32 %v1478, %v1481
          %vm1483 = vcmp.lt.s32.totalorder %v1482, 0
          %v1484 = vsub.s32 0, %v1482
          %v1485 = vsel %vm1483, %v1484, %v1482
          %v1486 = vclz %v1485
          %v1487 = vsub.s32 %v1486, 2
          %vm1488 = vcmp.gt.s32.totalorder 0, %v1487
          %v1489 = vsel %vm1488, 0, %v1487
          %v1490 = vsub.s32 32, %v1489
          %v1491 = vshll.u32 %v1482, %v1489
          %v1492 = vshrl.u32 %v1474, %v1490
          %v1493 = vor.u32 %v1491, %v1492
          %v1494 = vsub.s32 4294967266, %v1489
          %v1495 = vadd.s32 %v1494, 127
          %v1496 = vshll.u32 %v1495, 23
          %v1497 = vor.u32 4788187, %v1496
          %v1498 = vand.u32 2147483647, %v1497
          %v1500 = vcvt.s32.f32 %v1493
          %v1501 = vmul.f32 %v1500, %v1498
          %v1502 = vxor.u32 %v1501, 2147483648
          %v1503 = vsel %vm1382, %v1502, %v1501
          %v1504 = vsub.s32 4, %v1480
          %v1505 = vsel %vm1382, %v1504, %v1480
          %v1506 = vsel %vm1381, %v1225, %v1503
          %v1507 = vsel %vm1381, 0, %v1505
          %v1508 = vmul.f32 %v1506, %v1506
          %v1509 = vmul.f32 %v1508, -0.001358992
          %v1510 = vadd.f32 %v1509, 0.041655596
          %v1511 = vmul.f32 %v1508, %v1510
          %v1512 = vadd.f32 %v1511, -0.4999988
          %v1513 = vmul.f32 %v1508, %v1512
          %v1514 = vadd.f32 1.0, %v1513
          %v1515 = vmul.f32 %v1506, %v1506
          %v1516 = vmul.f32 %v1515, -0.00019511016
          %v1517 = vadd.f32 %v1516, 0.008332121
          %v1518 = vmul.f32 %v1515, %v1517
          %v1519 = vadd.f32 %v1518, -0.16666654
          %v1520 = vmul.f32 %v1515, %v1519
          %v1521 = vadd.f32 %v1520, 1.0
          %v1522 = vmul.f32 %v1521, %v1506
          %vm1523 = vweird.f32 %v1225
          %v1524 = vand.u32 %v1507, 3
          %vm1525 = vcmp.lt.s32.totalorder %v1524, 2
          %vm1526 = vcmp.eq.s32.totalorder %v1524, 0
          %v1527 = vxor.u32 %v1522, 2147483648
          %v1528 = vsel %vm1526, %v1514, %v1527
          %vm1529 = vcmp.eq.s32.totalorder %v1524, 2
          %v1530 = vxor.u32 %v1514, 2147483648
          %v1531 = vsel %vm1529, %v1530, %v1522
          %v1532 = vsel %vm1525, %v1528, %v1531
          %v1533 = vsel %vm1523, nan, %v1532
          %v1534 = vsel %vm1207, %v1379, 0.0
          %v1535 = vsel %vm1208, %v1533, 0.0
          %v1536 = vmul.f32 %v1223, %v1221
          %v1537 = vmul.f32 %v1223, %v1222
          %v1538 = vand.u32 2147483647, %v1536
          %vm1539 = vcmp.le.f32.partialorder %v1538, 0.7853982
          %vm1540 = vcmp.lt.s32.totalorder %v1536, 0
          %v1541 = vand.u32 %v1536, 2139095040
          %v1542 = vshrl.u32 %v1541, 23
          %v1543 = vsub.s32 %v1542, 127
          %v1544 = vand.u32 2147483647, %v1536
          %v1545 = vand.u32 %v1544, 8388607
          %v1546 = vor.u32 %v1545, 8388608
          %v1547 = vsub.s32 0, %v1546
          %v1548 = vadd.s32 %v1543, 1
          %vm1549 = vcmp.gt.s32.totalorder %v1548, 0
          %v1550 = vsel %vm1549, %v1548, 0
          %v1551 = vshrl.u32 %v1550, 5
          %v1552 = vand.u32 %v1550, 31
          %v1553 = vsub.s32 32, %v1552
          %v1554 = vshrl.u32 683565275, %v1553
          %v1555 = vshll.u32 683565275, %v1552
          %v1556 = vshrl.u32 2475754826, %v1553
          %v1557 = vor.u32 %v1555, %v1556
          %v1558 = vshll.u32 2475754826, %v1552
          %v1559 = vshrl.u32 2131351028, %v1553
          %v1560 = vor.u32 %v1558, %v1559
          %v1561 = vshll.u32 2131351028, %v1552
          %v1562 = vshrl.u32 2102212464, %v1553
          %v1563 = vor.u32 %v1561, %v1562
          %v1564 = vshll.u32 2102212464, %v1552
          %v1565 = vshrl.u32 920167782, %v1553
          %v1566 = vor.u32 %v1564, %v1565
          %v1567 = vshll.u32 920167782, %v1552
          %v1568 = vshrl.u32 1326507024, %v1553
          %v1569 = vor.u32 %v1567, %v1568
          %vm1570 = vcmp.lt.s32.totalorder %v1551, 1
          %vm1571 = vcmp.lt.s32.totalorder %v1551, 2
          %vm1572 = vcmp.lt.s32.totalorder %v1551, 3
          %vm1573 = vcmp.lt.s32.totalorder %v1551, 4
          %v1574 = vsel %vm1570, %v1554, %v1557
          %v1575 = vsel %vm1573, %v1563, 2102212464
          %v1576 = vsel %vm1572, %v1560, %v1575
          %v1577 = vsel %vm1571, %v1574, %v1576
          %v1578 = vsel %vm1570, %v1557, %v1560
          %v1579 = vsel %vm1573, %v1566, 920167782
          %v1580 = vsel %vm1572, %v1563, %v1579
          %v1581 = vsel %vm1571, %v1578, %v1580
          %v1582 = vsel %vm1570, %v1560, %v1563
          %v1583 = vsel %vm1573, %v1569, 1326507024
          %v1584 = vsel %vm1572, %v1566, %v1583
          %v1585 = vsel %vm1571, %v1582, %v1584
          %v1586 = vshll.u32 %v1546, 8
          %v1587 = vand.u32 %v1586, 65535
          %v1588 = vshrl.u32 %v1586, 16
          %v1589 = vand.u32 %v1585, 65535
          %v1590 = vshrl.u32 %v1585, 16
          %v1591 = vmul.u32 %v1587, %v1589
          %v1592 = vmul.u32 %v1587, %v1590
          %v1593 = vmul.u32 %v1588, %v1589
          %v1594 = vmul.u32 %v1588, %v1590
          %v1595 = vshll.u32 %v1592, 16
          %v1596 = vshrl.u32 %v1592, 16
          %v1597 = vshll.u32 %v1593, 16
          %v1598 = vshrl.u32 %v1593, 16
          %vm1599 = vc.u32 %v1591, %v1595
          %v1600 = vsel %vm1599, 1, 0
          %v1601 = vadd.s32 %v1591, %v1595
          %v1602 = vadd.s32 %v1594, %v1600
          %vm1603 = vc.u32 %v1601, %v1597
          %v1604 = vsel %vm1603, 1, 0
          %v1605 = vadd.s32 %v1601, %v1597
          %v1606 = vadd.s32 %v1602, %v1604
          %v1607 = vadd.s32 %v1606, %v1596
          %v1608 = vadd.s32 %v1607, %v1598
          %v1609 = vand.u32 %v1586, 65535
          %v1610 = vshrl.u32 %v1586, 16
          %v1611 = vand.u32 %v1581, 65535
          %v1612 = vshrl.u32 %v1581, 16
          %v1613 = vmul.u32 %v1609, %v1611
          %v1614 = vmul.u32 %v1609, %v1612
          %v1615 = vmul.u32 %v1610, %v1611
          %v1616 = vmul.u32 %v1610, %v1612
          %v1617 = vshll.u32 %v1614, 16
          %v1618 = vshrl.u32 %v1614, 16
          %v1619 = vshll.u32 %v1615, 16
          %v1620 = vshrl.u32 %v1615, 16
          %vm1621 = vc.u32 %v1613, %v1617
          %v1622 = vsel %vm1621, 1, 0
          %v1623 = vadd.s32 %v1613, %v1617
          %v1624 = vadd.s32 %v1616, %v1622
          %vm1625 = vc.u32 %v1623, %v1619
          %v1626 = vsel %vm1625, 1, 0
          %v1627 = vadd.s32 %v1623, %v1619
          %v1628 = vadd.s32 %v1624, %v1626
          %v1629 = vadd.s32 %v1628, %v1618
          %v1630 = vadd.s32 %v1629, %v1620
          %v1631 = vmul.u32 %v1586, %v1577
          %v1632 = vadd.s32 %v1608, %v1627
          %vm1633 = vc.u32 %v1608, %v1627
          %v1634 = vadd.s32 %v1630, 1
          %v1635 = vsel %vm1633, %v1634, %v1630
          %v1636 = vadd.s32 %v1631, %v1635
          %v1637 = vadd.s32 %v1636, 536870912
          %v1638 = vshrl.u32 %v1637, 30
          %v1639 = vshll.u32 %v1638, 30
          %v1640 = vsub.s32 %v1636, %v1639
          %vm1641 = vcmp.lt.s32.totalorder %v1640, 0
          %v1642 = vsub.s32 0, %v1640
          %v1643 = vsel %vm1641, %v1642, %v1640
          %v1644 = vclz %v1643
          %v1645 = vsub.s32 %v1644, 2
          %vm1646 = vcmp.gt.s32.totalorder 0, %v1645
          %v1647 = vsel %vm1646, 0, %v1645
          %v1648 = vsub.s32 32, %v1647
          %v1649 = vshll.u32 %v1640, %v1647
          %v1650 = vshrl.u32 %v1632, %v1648
          %v1651 = vor.u32 %v1649, %v1650
          %v1652 = vsub.s32 4294967266, %v1647
          %v1653 = vadd.s32 %v1652, 127
          %v1654 = vshll.u32 %v1653, 23
          %v1655 = vor.u32 4788187, %v1654
          %v1656 = vand.u32 2147483647, %v1655
          %v1658 = vcvt.s32.f32 %v1651
          %v1659 = vmul.f32 %v1658, %v1656
          %v1660 = vxor.u32 %v1659, 2147483648
          %v1661 = vsel %vm1540, %v1660, %v1659
          %v1662 = vsub.s32 4, %v1638
          %v1663 = vsel %vm1540, %v1662, %v1638
          %v1664 = vsel %vm1539, %v1536, %v1661
          %v1665 = vsel %vm1539, 0, %v1663
          %v1666 = vmul.f32 %v1664, %v1664
          %v1667 = vmul.f32 %v1666, -0.001358992
          %v1668 = vadd.f32 %v1667, 0.041655596
          %v1669 = vmul.f32 %v1666, %v1668
          %v1670 = vadd.f32 %v1669, -0.4999988
          %v1671 = vmul.f32 %v1666, %v1670
          %v1672 = vadd.f32 1.0, %v1671
          %v1673 = vmul.f32 %v1664, %v1664
          %v1674 = vmul.f32 %v1673, -0.00019511016
          %v1675 = vadd.f32 %v1674, 0.008332121
          %v1676 = vmul.f32 %v1673, %v1675
          %v1677 = vadd.f32 %v1676, -0.16666654
          %v1678 = vmul.f32 %v1673, %v1677
          %v1679 = vadd.f32 %v1678, 1.0
          %v1680 = vmul.f32 %v1679, %v1664
          %vm1681 = vweird.f32 %v1536
          %v1682 = vand.u32 %v1665, 3
          %vm1683 = vcmp.lt.s32.totalorder %v1682, 2
          %vm1684 = vcmp.eq.s32.totalorder %v1682, 0
          %v1685 = vxor.u32 %v1680, 2147483648
          %v1686 = vsel %vm1684, %v1672, %v1685
          %vm1687 = vcmp.eq.s32.totalorder %v1682, 2
          %v1688 = vxor.u32 %v1672, 2147483648
          %v1689 = vsel %vm1687, %v1688, %v1680
          %v1690 = vsel %vm1683, %v1686, %v1689
          %v1691 = vsel %vm1681, nan, %v1690
          %v1692 = vand.u32 2147483647, %v1537
          %vm1693 = vcmp.le.f32.partialorder %v1692, 0.7853982
          %vm1694 = vcmp.lt.s32.totalorder %v1537, 0
          %v1695 = vand.u32 %v1537, 2139095040
          %v1696 = vshrl.u32 %v1695, 23
          %v1697 = vsub.s32 %v1696, 127
          %v1698 = vand.u32 2147483647, %v1537
          %v1699 = vand.u32 %v1698, 8388607
          %v1700 = vor.u32 %v1699, 8388608
          %v1701 = vsub.s32 0, %v1700
          %v1702 = vadd.s32 %v1697, 1
          %vm1703 = vcmp.gt.s32.totalorder %v1702, 0
          %v1704 = vsel %vm1703, %v1702, 0
          %v1705 = vshrl.u32 %v1704, 5
          %v1706 = vand.u32 %v1704, 31
          %v1707 = vsub.s32 32, %v1706
          %v1708 = vshrl.u32 683565275, %v1707
          %v1709 = vshll.u32 683565275, %v1706
          %v1710 = vshrl.u32 2475754826, %v1707
          %v1711 = vor.u32 %v1709, %v1710
          %v1712 = vshll.u32 2475754826, %v1706
          %v1713 = vshrl.u32 2131351028, %v1707
          %v1714 = vor.u32 %v1712, %v1713
          %v1715 = vshll.u32 2131351028, %v1706
          %v1716 = vshrl.u32 2102212464, %v1707
          %v1717 = vor.u32 %v1715, %v1716
          %v1718 = vshll.u32 2102212464, %v1706
          %v1719 = vshrl.u32 920167782, %v1707
          %v1720 = vor.u32 %v1718, %v1719
          %v1721 = vshll.u32 920167782, %v1706
          %v1722 = vshrl.u32 1326507024, %v1707
          %v1723 = vor.u32 %v1721, %v1722
          %vm1724 = vcmp.lt.s32.totalorder %v1705, 1
          %vm1725 = vcmp.lt.s32.totalorder %v1705, 2
          %vm1726 = vcmp.lt.s32.totalorder %v1705, 3
          %vm1727 = vcmp.lt.s32.totalorder %v1705, 4
          %v1728 = vsel %vm1724, %v1708, %v1711
          %v1729 = vsel %vm1727, %v1717, 2102212464
          %v1730 = vsel %vm1726, %v1714, %v1729
          %v1731 = vsel %vm1725, %v1728, %v1730
          %v1732 = vsel %vm1724, %v1711, %v1714
          %v1733 = vsel %vm1727, %v1720, 920167782
          %v1734 = vsel %vm1726, %v1717, %v1733
          %v1735 = vsel %vm1725, %v1732, %v1734
          %v1736 = vsel %vm1724, %v1714, %v1717
          %v1737 = vsel %vm1727, %v1723, 1326507024
          %v1738 = vsel %vm1726, %v1720, %v1737
          %v1739 = vsel %vm1725, %v1736, %v1738
          %v1740 = vshll.u32 %v1700, 8
          %v1741 = vand.u32 %v1740, 65535
          %v1742 = vshrl.u32 %v1740, 16
          %v1743 = vand.u32 %v1739, 65535
          %v1744 = vshrl.u32 %v1739, 16
          %v1745 = vmul.u32 %v1741, %v1743
          %v1746 = vmul.u32 %v1741, %v1744
          %v1747 = vmul.u32 %v1742, %v1743
          %v1748 = vmul.u32 %v1742, %v1744
          %v1749 = vshll.u32 %v1746, 16
          %v1750 = vshrl.u32 %v1746, 16
          %v1751 = vshll.u32 %v1747, 16
          %v1752 = vshrl.u32 %v1747, 16
          %vm1753 = vc.u32 %v1745, %v1749
          %v1754 = vsel %vm1753, 1, 0
          %v1755 = vadd.s32 %v1745, %v1749
          %v1756 = vadd.s32 %v1748, %v1754
          %vm1757 = vc.u32 %v1755, %v1751
          %v1758 = vsel %vm1757, 1, 0
          %v1759 = vadd.s32 %v1755, %v1751
          %v1760 = vadd.s32 %v1756, %v1758
          %v1761 = vadd.s32 %v1760, %v1750
          %v1762 = vadd.s32 %v1761, %v1752
          %v1763 = vand.u32 %v1740, 65535
          %v1764 = vshrl.u32 %v1740, 16
          %v1765 = vand.u32 %v1735, 65535
          %v1766 = vshrl.u32 %v1735, 16
          %v1767 = vmul.u32 %v1763, %v1765
          %v1768 = vmul.u32 %v1763, %v1766
          %v1769 = vmul.u32 %v1764, %v1765
          %v1770 = vmul.u32 %v1764, %v1766
          %v1771 = vshll.u32 %v1768, 16
          %v1772 = vshrl.u32 %v1768, 16
          %v1773 = vshll.u32 %v1769, 16
          %v1774 = vshrl.u32 %v1769, 16
          %vm1775 = vc.u32 %v1767, %v1771
          %v1776 = vsel %vm1775, 1, 0
          %v1777 = vadd.s32 %v1767, %v1771
          %v1778 = vadd.s32 %v1770, %v1776
          %vm1779 = vc.u32 %v1777, %v1773
          %v1780 = vsel %vm1779, 1, 0
          %v1781 = vadd.s32 %v1777, %v1773
          %v1782 = vadd.s32 %v1778, %v1780
          %v1783 = vadd.s32 %v1782, %v1772
          %v1784 = vadd.s32 %v1783, %v1774
          %v1785 = vmul.u32 %v1740, %v1731
          %v1786 = vadd.s32 %v1762, %v1781
          %vm1787 = vc.u32 %v1762, %v1781
          %v1788 = vadd.s32 %v1784, 1
          %v1789 = vsel %vm1787, %v1788, %v1784
          %v1790 = vadd.s32 %v1785, %v1789
          %v1791 = vadd.s32 %v1790, 536870912
          %v1792 = vshrl.u32 %v1791, 30
          %v1793 = vshll.u32 %v1792, 30
          %v1794 = vsub.s32 %v1790, %v1793
          %vm1795 = vcmp.lt.s32.totalorder %v1794, 0
          %v1796 = vsub.s32 0, %v1794
          %v1797 = vsel %vm1795, %v1796, %v1794
          %v1798 = vclz %v1797
          %v1799 = vsub.s32 %v1798, 2
          %vm1800 = vcmp.gt.s32.totalorder 0, %v1799
          %v1801 = vsel %vm1800, 0, %v1799
          %v1802 = vsub.s32 32, %v1801
          %v1803 = vshll.u32 %v1794, %v1801
          %v1804 = vshrl.u32 %v1786, %v1802
          %v1805 = vor.u32 %v1803, %v1804
          %v1806 = vsub.s32 4294967266, %v1801
          %v1807 = vadd.s32 %v1806, 127
          %v1808 = vshll.u32 %v1807, 23
          %v1809 = vor.u32 4788187, %v1808
          %v1810 = vand.u32 2147483647, %v1809
          %v1812 = vcvt.s32.f32 %v1805
          %v1813 = vmul.f32 %v1812, %v1810
          %v1814 = vxor.u32 %v1813, 2147483648
          %v1815 = vsel %vm1694, %v1814, %v1813
          %v1816 = vsub.s32 4, %v1792
          %v1817 = vsel %vm1694, %v1816, %v1792
          %v1818 = vsel %vm1693, %v1537, %v1815
          %v1819 = vsel %vm1693, 0, %v1817
          %v1820 = vmul.f32 %v1818, %v1818
          %v1821 = vmul.f32 %v1820, -0.001358992
          %v1822 = vadd.f32 %v1821, 0.041655596
          %v1823 = vmul.f32 %v1820, %v1822
          %v1824 = vadd.f32 %v1823, -0.4999988
          %v1825 = vmul.f32 %v1820, %v1824
          %v1826 = vadd.f32 1.0, %v1825
          %v1827 = vmul.f32 %v1818, %v1818
          %v1828 = vmul.f32 %v1827, -0.00019511016
          %v1829 = vadd.f32 %v1828, 0.008332121
          %v1830 = vmul.f32 %v1827, %v1829
          %v1831 = vadd.f32 %v1830, -0.16666654
          %v1832 = vmul.f32 %v1827, %v1831
          %v1833 = vadd.f32 %v1832, 1.0
          %v1834 = vmul.f32 %v1833, %v1818
          %vm1835 = vweird.f32 %v1537
          %v1836 = vand.u32 %v1819, 3
          %vm1837 = vcmp.lt.s32.totalorder %v1836, 2
          %vm1838 = vcmp.eq.s32.totalorder %v1836, 0
          %v1839 = vxor.u32 %v1834, 2147483648
          %v1840 = vsel %vm1838, %v1826, %v1839
          %vm1841 = vcmp.eq.s32.totalorder %v1836, 2
          %v1842 = vxor.u32 %v1826, 2147483648
          %v1843 = vsel %vm1841, %v1842, %v1834
          %v1844 = vsel %vm1837, %v1840, %v1843
          %v1845 = vsel %vm1835, nan, %v1844
          %v1846 = vmul.f32 %v1534, %v1691
          %v1847 = vmul.f32 %v1535, %v1845
          %vm1848 = vcmp.le.s32.totalorder %v1178, %v1175
          %vm1849 = vcmp.le.s32.totalorder %v1178, %v1176
          %v1850 = vsel %vm1848, %v1846, 0.0
          %v1851 = vsel %vm1849, %v1847, 0.0
          %vm1852 = vcmp.eq.s32.totalorder %v1175, %v1178
          %vm1853 = vcmp.eq.s32.totalorder %v1176, %v1178
          %v1854 = vsel %vm1852, 1, 0
          %v1855 = vsel %vm1853, 1, 0
          %v1856 = vcvt.s32.f32 %v1854
          %v1857 = vcvt.s32.f32 %v1855
          %v1858 = vsub.f32 %v1850, %v1856
          %v1859 = vsub.f32 %v1851, %v1857
          %vm1860 = vcmask 130048
          %1861 = vst.msk [vmem:[%s281] sm:$0xff] %vm1860, %v1858
          %1862 = vst.msk [vmem:[%s281 + $0x8] sm:$0xff] %vm1860, %v1859
        $region80: #{tpu_custom_call.1} parent=39 // pred_fallthru
          _
        %p1863 = scmp.ge.s32.totalorder %s27, 7
        // Predicated region
        $region81: #{tpu_custom_call.1} parent=39 // pred_check
          %p1864 = pneg %p1863
        $region82: #{tpu_custom_call.1} parent=39 // pred_check_branch
          %1866 = sbr.rel (%p1864) target = $region84
        $region83: #{tpu_custom_call.1} parent=39 // pred_region
          %v1867 = vlaneseq
          %v1868 = vshrl.u32 %v1867, 7
          %v1869 = vadd.s32 %v1868, 8
          %v1870 = vstv %s283
          %v1871 = vadd.s32 %v1868, %v1870
          %v1872 = vadd.s32 %v1869, %v1870
          %v1873 = vlaneseq
          %v1874 = vand.u32 %v1873, 127
          %v1875 = vcvt.s32.f32 %v1871
          %v1876 = vcvt.s32.f32 %v1872
          %v1877 = vcvt.s32.f32 %v1874
          %v1878 = vadd.f32 %v1875, 0.5
          %v1879 = vadd.f32 %v1876, 0.5
          %v1880 = vstv %s288
          %v1881 = vmul.f32 %v1878, %v1880
          %v1882 = vmul.f32 %v1879, %v1880
          %v1883 = vfloor.f32 %v1881
          %v1884 = vfloor.f32 %v1882
          %v1885 = vadd.f32 %v1877, 0.5
          %v1886 = vmul.f32 %v1885, %v1880
          %v1887 = vfloor.f32 %v1886
          %v1888 = vsub.f32 %v1883, %v1887
          %v1889 = vsub.f32 %v1884, %v1887
          %v1890 = vand.u32 2147483647, %v1888
          %v1891 = vand.u32 2147483647, %v1889
          %vm1892 = vcmp.gt.f32.partialorder %v1890, 200.0
          %vm1893 = vcmp.gt.f32.partialorder %v1891, 200.0
          %v1894 = vsel %vm1892, 0.0, %v1890
          %v1895 = vsel %vm1893, 0.0, %v1891
          %v1896 = vstv %s287
          %v1897 = vmul.f32 %v1896, %v1883
          %v1898 = vmul.f32 %v1896, %v1884
          %v1899 = vsub.f32 %v1875, %v1897
          %v1900 = vsub.f32 %v1876, %v1898
          %v1901 = vmul.f32 %v1896, %v1887
          %v1902 = vsub.f32 %v1877, %v1901
          %vm1903 = vcmp.eq.f32.partialorder %v1899, %v1902
          %vm1904 = vcmp.eq.f32.partialorder %v1900, %v1902
          %v1905 = vsub.s32 %v1871, %v1874
          %v1906 = vsub.s32 %v1872, %v1874
          %vm1907 = vcmp.lt.s32.totalorder %v1905, 0
          %v1908 = vsub.s32 0, %v1905
          %v1909 = vsel %vm1907, %v1908, %v1905
          %vm1910 = vcmp.lt.s32.totalorder %v1906, 0
          %v1911 = vsub.s32 0, %v1906
          %v1912 = vsel %vm1910, %v1911, %v1906
          %vm1913 = vcmp.gt.s32.totalorder %v1909, 200
          %vm1914 = vcmp.gt.s32.totalorder %v1912, 200
          %v1915 = vsel %vm1913, 0, %v1909
          %v1916 = vsel %vm1914, 0, %v1912
          %v1917 = vcvt.s32.f32 %v1915
          %v1918 = vcvt.s32.f32 %v1916
          %v1919 = vstv %s286
          %v1920 = vmul.f32 %v1919, %v1894
          %v1921 = vmul.f32 %v1919, %v1895
          %v1922 = vand.u32 2147483647, %v1920
          %vm1923 = vcmp.le.f32.partialorder %v1922, 0.7853982
          %vm1924 = vcmp.lt.s32.totalorder %v1920, 0
          %v1925 = vand.u32 %v1920, 2139095040
          %v1926 = vshrl.u32 %v1925, 23
          %v1927 = vsub.s32 %v1926, 127
          %v1928 = vand.u32 2147483647, %v1920
          %v1929 = vand.u32 %v1928, 8388607
          %v1930 = vor.u32 %v1929, 8388608
          %v1931 = vsub.s32 0, %v1930
          %v1932 = vadd.s32 %v1927, 1
          %vm1933 = vcmp.gt.s32.totalorder %v1932, 0
          %v1934 = vsel %vm1933, %v1932, 0
          %v1935 = vshrl.u32 %v1934, 5
          %v1936 = vand.u32 %v1934, 31
          %v1937 = vsub.s32 32, %v1936
          %v1938 = vshrl.u32 683565275, %v1937
          %v1939 = vshll.u32 683565275, %v1936
          %v1940 = vshrl.u32 2475754826, %v1937
          %v1941 = vor.u32 %v1939, %v1940
          %v1942 = vshll.u32 2475754826, %v1936
          %v1943 = vshrl.u32 2131351028, %v1937
          %v1944 = vor.u32 %v1942, %v1943
          %v1945 = vshll.u32 2131351028, %v1936
          %v1946 = vshrl.u32 2102212464, %v1937
          %v1947 = vor.u32 %v1945, %v1946
          %v1948 = vshll.u32 2102212464, %v1936
          %v1949 = vshrl.u32 920167782, %v1937
          %v1950 = vor.u32 %v1948, %v1949
          %v1951 = vshll.u32 920167782, %v1936
          %v1952 = vshrl.u32 1326507024, %v1937
          %v1953 = vor.u32 %v1951, %v1952
          %vm1954 = vcmp.lt.s32.totalorder %v1935, 1
          %vm1955 = vcmp.lt.s32.totalorder %v1935, 2
          %vm1956 = vcmp.lt.s32.totalorder %v1935, 3
          %vm1957 = vcmp.lt.s32.totalorder %v1935, 4
          %v1958 = vsel %vm1954, %v1938, %v1941
          %v1959 = vsel %vm1957, %v1947, 2102212464
          %v1960 = vsel %vm1956, %v1944, %v1959
          %v1961 = vsel %vm1955, %v1958, %v1960
          %v1962 = vsel %vm1954, %v1941, %v1944
          %v1963 = vsel %vm1957, %v1950, 920167782
          %v1964 = vsel %vm1956, %v1947, %v1963
          %v1965 = vsel %vm1955, %v1962, %v1964
          %v1966 = vsel %vm1954, %v1944, %v1947
          %v1967 = vsel %vm1957, %v1953, 1326507024
          %v1968 = vsel %vm1956, %v1950, %v1967
          %v1969 = vsel %vm1955, %v1966, %v1968
          %v1970 = vshll.u32 %v1930, 8
          %v1971 = vand.u32 %v1970, 65535
          %v1972 = vshrl.u32 %v1970, 16
          %v1973 = vand.u32 %v1969, 65535
          %v1974 = vshrl.u32 %v1969, 16
          %v1975 = vmul.u32 %v1971, %v1973
          %v1976 = vmul.u32 %v1971, %v1974
          %v1977 = vmul.u32 %v1972, %v1973
          %v1978 = vmul.u32 %v1972, %v1974
          %v1979 = vshll.u32 %v1976, 16
          %v1980 = vshrl.u32 %v1976, 16
          %v1981 = vshll.u32 %v1977, 16
          %v1982 = vshrl.u32 %v1977, 16
          %vm1983 = vc.u32 %v1975, %v1979
          %v1984 = vsel %vm1983, 1, 0
          %v1985 = vadd.s32 %v1975, %v1979
          %v1986 = vadd.s32 %v1978, %v1984
          %vm1987 = vc.u32 %v1985, %v1981
          %v1988 = vsel %vm1987, 1, 0
          %v1989 = vadd.s32 %v1985, %v1981
          %v1990 = vadd.s32 %v1986, %v1988
          %v1991 = vadd.s32 %v1990, %v1980
          %v1992 = vadd.s32 %v1991, %v1982
          %v1993 = vand.u32 %v1970, 65535
          %v1994 = vshrl.u32 %v1970, 16
          %v1995 = vand.u32 %v1965, 65535
          %v1996 = vshrl.u32 %v1965, 16
          %v1997 = vmul.u32 %v1993, %v1995
          %v1998 = vmul.u32 %v1993, %v1996
          %v1999 = vmul.u32 %v1994, %v1995
          %v2000 = vmul.u32 %v1994, %v1996
          %v2001 = vshll.u32 %v1998, 16
          %v2002 = vshrl.u32 %v1998, 16
          %v2003 = vshll.u32 %v1999, 16
          %v2004 = vshrl.u32 %v1999, 16
          %vm2005 = vc.u32 %v1997, %v2001
          %v2006 = vsel %vm2005, 1, 0
          %v2007 = vadd.s32 %v1997, %v2001
          %v2008 = vadd.s32 %v2000, %v2006
          %vm2009 = vc.u32 %v2007, %v2003
          %v2010 = vsel %vm2009, 1, 0
          %v2011 = vadd.s32 %v2007, %v2003
          %v2012 = vadd.s32 %v2008, %v2010
          %v2013 = vadd.s32 %v2012, %v2002
          %v2014 = vadd.s32 %v2013, %v2004
          %v2015 = vmul.u32 %v1970, %v1961
          %v2016 = vadd.s32 %v1992, %v2011
          %vm2017 = vc.u32 %v1992, %v2011
          %v2018 = vadd.s32 %v2014, 1
          %v2019 = vsel %vm2017, %v2018, %v2014
          %v2020 = vadd.s32 %v2015, %v2019
          %v2021 = vadd.s32 %v2020, 536870912
          %v2022 = vshrl.u32 %v2021, 30
          %v2023 = vshll.u32 %v2022, 30
          %v2024 = vsub.s32 %v2020, %v2023
          %vm2025 = vcmp.lt.s32.totalorder %v2024, 0
          %v2026 = vsub.s32 0, %v2024
          %v2027 = vsel %vm2025, %v2026, %v2024
          %v2028 = vclz %v2027
          %v2029 = vsub.s32 %v2028, 2
          %vm2030 = vcmp.gt.s32.totalorder 0, %v2029
          %v2031 = vsel %vm2030, 0, %v2029
          %v2032 = vsub.s32 32, %v2031
          %v2033 = vshll.u32 %v2024, %v2031
          %v2034 = vshrl.u32 %v2016, %v2032
          %v2035 = vor.u32 %v2033, %v2034
          %v2036 = vsub.s32 4294967266, %v2031
          %v2037 = vadd.s32 %v2036, 127
          %v2038 = vshll.u32 %v2037, 23
          %v2039 = vor.u32 4788187, %v2038
          %v2040 = vand.u32 2147483647, %v2039
          %v2042 = vcvt.s32.f32 %v2035
          %v2043 = vmul.f32 %v2042, %v2040
          %v2044 = vxor.u32 %v2043, 2147483648
          %v2045 = vsel %vm1924, %v2044, %v2043
          %v2046 = vsub.s32 4, %v2022
          %v2047 = vsel %vm1924, %v2046, %v2022
          %v2048 = vsel %vm1923, %v1920, %v2045
          %v2049 = vsel %vm1923, 0, %v2047
          %v2050 = vmul.f32 %v2048, %v2048
          %v2051 = vmul.f32 %v2050, -0.001358992
          %v2052 = vadd.f32 %v2051, 0.041655596
          %v2053 = vmul.f32 %v2050, %v2052
          %v2054 = vadd.f32 %v2053, -0.4999988
          %v2055 = vmul.f32 %v2050, %v2054
          %v2056 = vadd.f32 1.0, %v2055
          %v2057 = vmul.f32 %v2048, %v2048
          %v2058 = vmul.f32 %v2057, -0.00019511016
          %v2059 = vadd.f32 %v2058, 0.008332121
          %v2060 = vmul.f32 %v2057, %v2059
          %v2061 = vadd.f32 %v2060, -0.16666654
          %v2062 = vmul.f32 %v2057, %v2061
          %v2063 = vadd.f32 %v2062, 1.0
          %v2064 = vmul.f32 %v2063, %v2048
          %vm2065 = vweird.f32 %v1920
          %v2066 = vadd.s32 %v2049, 3
          %v2067 = vand.u32 %v2066, 3
          %vm2068 = vcmp.lt.s32.totalorder %v2067, 2
          %vm2069 = vcmp.eq.s32.totalorder %v2067, 0
          %v2070 = vxor.u32 %v2064, 2147483648
          %v2071 = vsel %vm2069, %v2056, %v2070
          %vm2072 = vcmp.eq.s32.totalorder %v2067, 2
          %v2073 = vxor.u32 %v2056, 2147483648
          %v2074 = vsel %vm2072, %v2073, %v2064
          %v2075 = vsel %vm2068, %v2071, %v2074
          %v2076 = vsel %vm2065, nan, %v2075
          %v2077 = vand.u32 2147483647, %v1921
          %vm2078 = vcmp.le.f32.partialorder %v2077, 0.7853982
          %vm2079 = vcmp.lt.s32.totalorder %v1921, 0
          %v2080 = vand.u32 %v1921, 2139095040
          %v2081 = vshrl.u32 %v2080, 23
          %v2082 = vsub.s32 %v2081, 127
          %v2083 = vand.u32 2147483647, %v1921
          %v2084 = vand.u32 %v2083, 8388607
          %v2085 = vor.u32 %v2084, 8388608
          %v2086 = vsub.s32 0, %v2085
          %v2087 = vadd.s32 %v2082, 1
          %vm2088 = vcmp.gt.s32.totalorder %v2087, 0
          %v2089 = vsel %vm2088, %v2087, 0
          %v2090 = vshrl.u32 %v2089, 5
          %v2091 = vand.u32 %v2089, 31
          %v2092 = vsub.s32 32, %v2091
          %v2093 = vshrl.u32 683565275, %v2092
          %v2094 = vshll.u32 683565275, %v2091
          %v2095 = vshrl.u32 2475754826, %v2092
          %v2096 = vor.u32 %v2094, %v2095
          %v2097 = vshll.u32 2475754826, %v2091
          %v2098 = vshrl.u32 2131351028, %v2092
          %v2099 = vor.u32 %v2097, %v2098
          %v2100 = vshll.u32 2131351028, %v2091
          %v2101 = vshrl.u32 2102212464, %v2092
          %v2102 = vor.u32 %v2100, %v2101
          %v2103 = vshll.u32 2102212464, %v2091
          %v2104 = vshrl.u32 920167782, %v2092
          %v2105 = vor.u32 %v2103, %v2104
          %v2106 = vshll.u32 920167782, %v2091
          %v2107 = vshrl.u32 1326507024, %v2092
          %v2108 = vor.u32 %v2106, %v2107
          %vm2109 = vcmp.lt.s32.totalorder %v2090, 1
          %vm2110 = vcmp.lt.s32.totalorder %v2090, 2
          %vm2111 = vcmp.lt.s32.totalorder %v2090, 3
          %vm2112 = vcmp.lt.s32.totalorder %v2090, 4
          %v2113 = vsel %vm2109, %v2093, %v2096
          %v2114 = vsel %vm2112, %v2102, 2102212464
          %v2115 = vsel %vm2111, %v2099, %v2114
          %v2116 = vsel %vm2110, %v2113, %v2115
          %v2117 = vsel %vm2109, %v2096, %v2099
          %v2118 = vsel %vm2112, %v2105, 920167782
          %v2119 = vsel %vm2111, %v2102, %v2118
          %v2120 = vsel %vm2110, %v2117, %v2119
          %v2121 = vsel %vm2109, %v2099, %v2102
          %v2122 = vsel %vm2112, %v2108, 1326507024
          %v2123 = vsel %vm2111, %v2105, %v2122
          %v2124 = vsel %vm2110, %v2121, %v2123
          %v2125 = vshll.u32 %v2085, 8
          %v2126 = vand.u32 %v2125, 65535
          %v2127 = vshrl.u32 %v2125, 16
          %v2128 = vand.u32 %v2124, 65535
          %v2129 = vshrl.u32 %v2124, 16
          %v2130 = vmul.u32 %v2126, %v2128
          %v2131 = vmul.u32 %v2126, %v2129
          %v2132 = vmul.u32 %v2127, %v2128
          %v2133 = vmul.u32 %v2127, %v2129
          %v2134 = vshll.u32 %v2131, 16
          %v2135 = vshrl.u32 %v2131, 16
          %v2136 = vshll.u32 %v2132, 16
          %v2137 = vshrl.u32 %v2132, 16
          %vm2138 = vc.u32 %v2130, %v2134
          %v2139 = vsel %vm2138, 1, 0
          %v2140 = vadd.s32 %v2130, %v2134
          %v2141 = vadd.s32 %v2133, %v2139
          %vm2142 = vc.u32 %v2140, %v2136
          %v2143 = vsel %vm2142, 1, 0
          %v2144 = vadd.s32 %v2140, %v2136
          %v2145 = vadd.s32 %v2141, %v2143
          %v2146 = vadd.s32 %v2145, %v2135
          %v2147 = vadd.s32 %v2146, %v2137
          %v2148 = vand.u32 %v2125, 65535
          %v2149 = vshrl.u32 %v2125, 16
          %v2150 = vand.u32 %v2120, 65535
          %v2151 = vshrl.u32 %v2120, 16
          %v2152 = vmul.u32 %v2148, %v2150
          %v2153 = vmul.u32 %v2148, %v2151
          %v2154 = vmul.u32 %v2149, %v2150
          %v2155 = vmul.u32 %v2149, %v2151
          %v2156 = vshll.u32 %v2153, 16
          %v2157 = vshrl.u32 %v2153, 16
          %v2158 = vshll.u32 %v2154, 16
          %v2159 = vshrl.u32 %v2154, 16
          %vm2160 = vc.u32 %v2152, %v2156
          %v2161 = vsel %vm2160, 1, 0
          %v2162 = vadd.s32 %v2152, %v2156
          %v2163 = vadd.s32 %v2155, %v2161
          %vm2164 = vc.u32 %v2162, %v2158
          %v2165 = vsel %vm2164, 1, 0
          %v2166 = vadd.s32 %v2162, %v2158
          %v2167 = vadd.s32 %v2163, %v2165
          %v2168 = vadd.s32 %v2167, %v2157
          %v2169 = vadd.s32 %v2168, %v2159
          %v2170 = vmul.u32 %v2125, %v2116
          %v2171 = vadd.s32 %v2147, %v2166
          %vm2172 = vc.u32 %v2147, %v2166
          %v2173 = vadd.s32 %v2169, 1
          %v2174 = vsel %vm2172, %v2173, %v2169
          %v2175 = vadd.s32 %v2170, %v2174
          %v2176 = vadd.s32 %v2175, 536870912
          %v2177 = vshrl.u32 %v2176, 30
          %v2178 = vshll.u32 %v2177, 30
          %v2179 = vsub.s32 %v2175, %v2178
          %vm2180 = vcmp.lt.s32.totalorder %v2179, 0
          %v2181 = vsub.s32 0, %v2179
          %v2182 = vsel %vm2180, %v2181, %v2179
          %v2183 = vclz %v2182
          %v2184 = vsub.s32 %v2183, 2
          %vm2185 = vcmp.gt.s32.totalorder 0, %v2184
          %v2186 = vsel %vm2185, 0, %v2184
          %v2187 = vsub.s32 32, %v2186
          %v2188 = vshll.u32 %v2179, %v2186
          %v2189 = vshrl.u32 %v2171, %v2187
          %v2190 = vor.u32 %v2188, %v2189
          %v2191 = vsub.s32 4294967266, %v2186
          %v2192 = vadd.s32 %v2191, 127
          %v2193 = vshll.u32 %v2192, 23
          %v2194 = vor.u32 4788187, %v2193
          %v2195 = vand.u32 2147483647, %v2194
          %v2197 = vcvt.s32.f32 %v2190
          %v2198 = vmul.f32 %v2197, %v2195
          %v2199 = vxor.u32 %v2198, 2147483648
          %v2200 = vsel %vm2079, %v2199, %v2198
          %v2201 = vsub.s32 4, %v2177
          %v2202 = vsel %vm2079, %v2201, %v2177
          %v2203 = vsel %vm2078, %v1921, %v2200
          %v2204 = vsel %vm2078, 0, %v2202
          %v2205 = vmul.f32 %v2203, %v2203
          %v2206 = vmul.f32 %v2205, -0.001358992
          %v2207 = vadd.f32 %v2206, 0.041655596
          %v2208 = vmul.f32 %v2205, %v2207
          %v2209 = vadd.f32 %v2208, -0.4999988
          %v2210 = vmul.f32 %v2205, %v2209
          %v2211 = vadd.f32 1.0, %v2210
          %v2212 = vmul.f32 %v2203, %v2203
          %v2213 = vmul.f32 %v2212, -0.00019511016
          %v2214 = vadd.f32 %v2213, 0.008332121
          %v2215 = vmul.f32 %v2212, %v2214
          %v2216 = vadd.f32 %v2215, -0.16666654
          %v2217 = vmul.f32 %v2212, %v2216
          %v2218 = vadd.f32 %v2217, 1.0
          %v2219 = vmul.f32 %v2218, %v2203
          %vm2220 = vweird.f32 %v1921
          %v2221 = vadd.s32 %v2204, 3
          %v2222 = vand.u32 %v2221, 3
          %vm2223 = vcmp.lt.s32.totalorder %v2222, 2
          %vm2224 = vcmp.eq.s32.totalorder %v2222, 0
          %v2225 = vxor.u32 %v2219, 2147483648
          %v2226 = vsel %vm2224, %v2211, %v2225
          %vm2227 = vcmp.eq.s32.totalorder %v2222, 2
          %v2228 = vxor.u32 %v2211, 2147483648
          %v2229 = vsel %vm2227, %v2228, %v2219
          %v2230 = vsel %vm2223, %v2226, %v2229
          %v2231 = vsel %vm2220, nan, %v2230
          %v2232 = vsel %vm1903, %v2076, 0.0
          %v2233 = vsel %vm1904, %v2231, 0.0
          %v2234 = vmul.f32 %v1919, %v1917
          %v2235 = vmul.f32 %v1919, %v1918
          %v2236 = vand.u32 2147483647, %v2234
          %vm2237 = vcmp.le.f32.partialorder %v2236, 0.7853982
          %vm2238 = vcmp.lt.s32.totalorder %v2234, 0
          %v2239 = vand.u32 %v2234, 2139095040
          %v2240 = vshrl.u32 %v2239, 23
          %v2241 = vsub.s32 %v2240, 127
          %v2242 = vand.u32 2147483647, %v2234
          %v2243 = vand.u32 %v2242, 8388607
          %v2244 = vor.u32 %v2243, 8388608
          %v2245 = vsub.s32 0, %v2244
          %v2246 = vadd.s32 %v2241, 1
          %vm2247 = vcmp.gt.s32.totalorder %v2246, 0
          %v2248 = vsel %vm2247, %v2246, 0
          %v2249 = vshrl.u32 %v2248, 5
          %v2250 = vand.u32 %v2248, 31
          %v2251 = vsub.s32 32, %v2250
          %v2252 = vshrl.u32 683565275, %v2251
          %v2253 = vshll.u32 683565275, %v2250
          %v2254 = vshrl.u32 2475754826, %v2251
          %v2255 = vor.u32 %v2253, %v2254
          %v2256 = vshll.u32 2475754826, %v2250
          %v2257 = vshrl.u32 2131351028, %v2251
          %v2258 = vor.u32 %v2256, %v2257
          %v2259 = vshll.u32 2131351028, %v2250
          %v2260 = vshrl.u32 2102212464, %v2251
          %v2261 = vor.u32 %v2259, %v2260
          %v2262 = vshll.u32 2102212464, %v2250
          %v2263 = vshrl.u32 920167782, %v2251
          %v2264 = vor.u32 %v2262, %v2263
          %v2265 = vshll.u32 920167782, %v2250
          %v2266 = vshrl.u32 1326507024, %v2251
          %v2267 = vor.u32 %v2265, %v2266
          %vm2268 = vcmp.lt.s32.totalorder %v2249, 1
          %vm2269 = vcmp.lt.s32.totalorder %v2249, 2
          %vm2270 = vcmp.lt.s32.totalorder %v2249, 3
          %vm2271 = vcmp.lt.s32.totalorder %v2249, 4
          %v2272 = vsel %vm2268, %v2252, %v2255
          %v2273 = vsel %vm2271, %v2261, 2102212464
          %v2274 = vsel %vm2270, %v2258, %v2273
          %v2275 = vsel %vm2269, %v2272, %v2274
          %v2276 = vsel %vm2268, %v2255, %v2258
          %v2277 = vsel %vm2271, %v2264, 920167782
          %v2278 = vsel %vm2270, %v2261, %v2277
          %v2279 = vsel %vm2269, %v2276, %v2278
          %v2280 = vsel %vm2268, %v2258, %v2261
          %v2281 = vsel %vm2271, %v2267, 1326507024
          %v2282 = vsel %vm2270, %v2264, %v2281
          %v2283 = vsel %vm2269, %v2280, %v2282
          %v2284 = vshll.u32 %v2244, 8
          %v2285 = vand.u32 %v2284, 65535
          %v2286 = vshrl.u32 %v2284, 16
          %v2287 = vand.u32 %v2283, 65535
          %v2288 = vshrl.u32 %v2283, 16
          %v2289 = vmul.u32 %v2285, %v2287
          %v2290 = vmul.u32 %v2285, %v2288
          %v2291 = vmul.u32 %v2286, %v2287
          %v2292 = vmul.u32 %v2286, %v2288
          %v2293 = vshll.u32 %v2290, 16
          %v2294 = vshrl.u32 %v2290, 16
          %v2295 = vshll.u32 %v2291, 16
          %v2296 = vshrl.u32 %v2291, 16
          %vm2297 = vc.u32 %v2289, %v2293
          %v2298 = vsel %vm2297, 1, 0
          %v2299 = vadd.s32 %v2289, %v2293
          %v2300 = vadd.s32 %v2292, %v2298
          %vm2301 = vc.u32 %v2299, %v2295
          %v2302 = vsel %vm2301, 1, 0
          %v2303 = vadd.s32 %v2299, %v2295
          %v2304 = vadd.s32 %v2300, %v2302
          %v2305 = vadd.s32 %v2304, %v2294
          %v2306 = vadd.s32 %v2305, %v2296
          %v2307 = vand.u32 %v2284, 65535
          %v2308 = vshrl.u32 %v2284, 16
          %v2309 = vand.u32 %v2279, 65535
          %v2310 = vshrl.u32 %v2279, 16
          %v2311 = vmul.u32 %v2307, %v2309
          %v2312 = vmul.u32 %v2307, %v2310
          %v2313 = vmul.u32 %v2308, %v2309
          %v2314 = vmul.u32 %v2308, %v2310
          %v2315 = vshll.u32 %v2312, 16
          %v2316 = vshrl.u32 %v2312, 16
          %v2317 = vshll.u32 %v2313, 16
          %v2318 = vshrl.u32 %v2313, 16
          %vm2319 = vc.u32 %v2311, %v2315
          %v2320 = vsel %vm2319, 1, 0
          %v2321 = vadd.s32 %v2311, %v2315
          %v2322 = vadd.s32 %v2314, %v2320
          %vm2323 = vc.u32 %v2321, %v2317
          %v2324 = vsel %vm2323, 1, 0
          %v2325 = vadd.s32 %v2321, %v2317
          %v2326 = vadd.s32 %v2322, %v2324
          %v2327 = vadd.s32 %v2326, %v2316
          %v2328 = vadd.s32 %v2327, %v2318
          %v2329 = vmul.u32 %v2284, %v2275
          %v2330 = vadd.s32 %v2306, %v2325
          %vm2331 = vc.u32 %v2306, %v2325
          %v2332 = vadd.s32 %v2328, 1
          %v2333 = vsel %vm2331, %v2332, %v2328
          %v2334 = vadd.s32 %v2329, %v2333
          %v2335 = vadd.s32 %v2334, 536870912
          %v2336 = vshrl.u32 %v2335, 30
          %v2337 = vshll.u32 %v2336, 30
          %v2338 = vsub.s32 %v2334, %v2337
          %vm2339 = vcmp.lt.s32.totalorder %v2338, 0
          %v2340 = vsub.s32 0, %v2338
          %v2341 = vsel %vm2339, %v2340, %v2338
          %v2342 = vclz %v2341
          %v2343 = vsub.s32 %v2342, 2
          %vm2344 = vcmp.gt.s32.totalorder 0, %v2343
          %v2345 = vsel %vm2344, 0, %v2343
          %v2346 = vsub.s32 32, %v2345
          %v2347 = vshll.u32 %v2338, %v2345
          %v2348 = vshrl.u32 %v2330, %v2346
          %v2349 = vor.u32 %v2347, %v2348
          %v2350 = vsub.s32 4294967266, %v2345
          %v2351 = vadd.s32 %v2350, 127
          %v2352 = vshll.u32 %v2351, 23
          %v2353 = vor.u32 4788187, %v2352
          %v2354 = vand.u32 2147483647, %v2353
          %v2356 = vcvt.s32.f32 %v2349
          %v2357 = vmul.f32 %v2356, %v2354
          %v2358 = vxor.u32 %v2357, 2147483648
          %v2359 = vsel %vm2238, %v2358, %v2357
          %v2360 = vsub.s32 4, %v2336
          %v2361 = vsel %vm2238, %v2360, %v2336
          %v2362 = vsel %vm2237, %v2234, %v2359
          %v2363 = vsel %vm2237, 0, %v2361
          %v2364 = vmul.f32 %v2362, %v2362
          %v2365 = vmul.f32 %v2364, -0.001358992
          %v2366 = vadd.f32 %v2365, 0.041655596
          %v2367 = vmul.f32 %v2364, %v2366
          %v2368 = vadd.f32 %v2367, -0.4999988
          %v2369 = vmul.f32 %v2364, %v2368
          %v2370 = vadd.f32 1.0, %v2369
          %v2371 = vmul.f32 %v2362, %v2362
          %v2372 = vmul.f32 %v2371, -0.00019511016
          %v2373 = vadd.f32 %v2372, 0.008332121
          %v2374 = vmul.f32 %v2371, %v2373
          %v2375 = vadd.f32 %v2374, -0.16666654
          %v2376 = vmul.f32 %v2371, %v2375
          %v2377 = vadd.f32 %v2376, 1.0
          %v2378 = vmul.f32 %v2377, %v2362
          %vm2379 = vweird.f32 %v2234
          %v2380 = vadd.s32 %v2363, 3
          %v2381 = vand.u32 %v2380, 3
          %vm2382 = vcmp.lt.s32.totalorder %v2381, 2
          %vm2383 = vcmp.eq.s32.totalorder %v2381, 0
          %v2384 = vxor.u32 %v2378, 2147483648
          %v2385 = vsel %vm2383, %v2370, %v2384
          %vm2386 = vcmp.eq.s32.totalorder %v2381, 2
          %v2387 = vxor.u32 %v2370, 2147483648
          %v2388 = vsel %vm2386, %v2387, %v2378
          %v2389 = vsel %vm2382, %v2385, %v2388
          %v2390 = vsel %vm2379, nan, %v2389
          %v2391 = vand.u32 2147483647, %v2235
          %vm2392 = vcmp.le.f32.partialorder %v2391, 0.7853982
          %vm2393 = vcmp.lt.s32.totalorder %v2235, 0
          %v2394 = vand.u32 %v2235, 2139095040
          %v2395 = vshrl.u32 %v2394, 23
          %v2396 = vsub.s32 %v2395, 127
          %v2397 = vand.u32 2147483647, %v2235
          %v2398 = vand.u32 %v2397, 8388607
          %v2399 = vor.u32 %v2398, 8388608
          %v2400 = vsub.s32 0, %v2399
          %v2401 = vadd.s32 %v2396, 1
          %vm2402 = vcmp.gt.s32.totalorder %v2401, 0
          %v2403 = vsel %vm2402, %v2401, 0
          %v2404 = vshrl.u32 %v2403, 5
          %v2405 = vand.u32 %v2403, 31
          %v2406 = vsub.s32 32, %v2405
          %v2407 = vshrl.u32 683565275, %v2406
          %v2408 = vshll.u32 683565275, %v2405
          %v2409 = vshrl.u32 2475754826, %v2406
          %v2410 = vor.u32 %v2408, %v2409
          %v2411 = vshll.u32 2475754826, %v2405
          %v2412 = vshrl.u32 2131351028, %v2406
          %v2413 = vor.u32 %v2411, %v2412
          %v2414 = vshll.u32 2131351028, %v2405
          %v2415 = vshrl.u32 2102212464, %v2406
          %v2416 = vor.u32 %v2414, %v2415
          %v2417 = vshll.u32 2102212464, %v2405
          %v2418 = vshrl.u32 920167782, %v2406
          %v2419 = vor.u32 %v2417, %v2418
          %v2420 = vshll.u32 920167782, %v2405
          %v2421 = vshrl.u32 1326507024, %v2406
          %v2422 = vor.u32 %v2420, %v2421
          %vm2423 = vcmp.lt.s32.totalorder %v2404, 1
          %vm2424 = vcmp.lt.s32.totalorder %v2404, 2
          %vm2425 = vcmp.lt.s32.totalorder %v2404, 3
          %vm2426 = vcmp.lt.s32.totalorder %v2404, 4
          %v2427 = vsel %vm2423, %v2407, %v2410
          %v2428 = vsel %vm2426, %v2416, 2102212464
          %v2429 = vsel %vm2425, %v2413, %v2428
          %v2430 = vsel %vm2424, %v2427, %v2429
          %v2431 = vsel %vm2423, %v2410, %v2413
          %v2432 = vsel %vm2426, %v2419, 920167782
          %v2433 = vsel %vm2425, %v2416, %v2432
          %v2434 = vsel %vm2424, %v2431, %v2433
          %v2435 = vsel %vm2423, %v2413, %v2416
          %v2436 = vsel %vm2426, %v2422, 1326507024
          %v2437 = vsel %vm2425, %v2419, %v2436
          %v2438 = vsel %vm2424, %v2435, %v2437
          %v2439 = vshll.u32 %v2399, 8
          %v2440 = vand.u32 %v2439, 65535
          %v2441 = vshrl.u32 %v2439, 16
          %v2442 = vand.u32 %v2438, 65535
          %v2443 = vshrl.u32 %v2438, 16
          %v2444 = vmul.u32 %v2440, %v2442
          %v2445 = vmul.u32 %v2440, %v2443
          %v2446 = vmul.u32 %v2441, %v2442
          %v2447 = vmul.u32 %v2441, %v2443
          %v2448 = vshll.u32 %v2445, 16
          %v2449 = vshrl.u32 %v2445, 16
          %v2450 = vshll.u32 %v2446, 16
          %v2451 = vshrl.u32 %v2446, 16
          %vm2452 = vc.u32 %v2444, %v2448
          %v2453 = vsel %vm2452, 1, 0
          %v2454 = vadd.s32 %v2444, %v2448
          %v2455 = vadd.s32 %v2447, %v2453
          %vm2456 = vc.u32 %v2454, %v2450
          %v2457 = vsel %vm2456, 1, 0
          %v2458 = vadd.s32 %v2454, %v2450
          %v2459 = vadd.s32 %v2455, %v2457
          %v2460 = vadd.s32 %v2459, %v2449
          %v2461 = vadd.s32 %v2460, %v2451
          %v2462 = vand.u32 %v2439, 65535
          %v2463 = vshrl.u32 %v2439, 16
          %v2464 = vand.u32 %v2434, 65535
          %v2465 = vshrl.u32 %v2434, 16
          %v2466 = vmul.u32 %v2462, %v2464
          %v2467 = vmul.u32 %v2462, %v2465
          %v2468 = vmul.u32 %v2463, %v2464
          %v2469 = vmul.u32 %v2463, %v2465
          %v2470 = vshll.u32 %v2467, 16
          %v2471 = vshrl.u32 %v2467, 16
          %v2472 = vshll.u32 %v2468, 16
          %v2473 = vshrl.u32 %v2468, 16
          %vm2474 = vc.u32 %v2466, %v2470
          %v2475 = vsel %vm2474, 1, 0
          %v2476 = vadd.s32 %v2466, %v2470
          %v2477 = vadd.s32 %v2469, %v2475
          %vm2478 = vc.u32 %v2476, %v2472
          %v2479 = vsel %vm2478, 1, 0
          %v2480 = vadd.s32 %v2476, %v2472
          %v2481 = vadd.s32 %v2477, %v2479
          %v2482 = vadd.s32 %v2481, %v2471
          %v2483 = vadd.s32 %v2482, %v2473
          %v2484 = vmul.u32 %v2439, %v2430
          %v2485 = vadd.s32 %v2461, %v2480
          %vm2486 = vc.u32 %v2461, %v2480
          %v2487 = vadd.s32 %v2483, 1
          %v2488 = vsel %vm2486, %v2487, %v2483
          %v2489 = vadd.s32 %v2484, %v2488
          %v2490 = vadd.s32 %v2489, 536870912
          %v2491 = vshrl.u32 %v2490, 30
          %v2492 = vshll.u32 %v2491, 30
          %v2493 = vsub.s32 %v2489, %v2492
          %vm2494 = vcmp.lt.s32.totalorder %v2493, 0
          %v2495 = vsub.s32 0, %v2493
          %v2496 = vsel %vm2494, %v2495, %v2493
          %v2497 = vclz %v2496
          %v2498 = vsub.s32 %v2497, 2
          %vm2499 = vcmp.gt.s32.totalorder 0, %v2498
          %v2500 = vsel %vm2499, 0, %v2498
          %v2501 = vsub.s32 32, %v2500
          %v2502 = vshll.u32 %v2493, %v2500
          %v2503 = vshrl.u32 %v2485, %v2501
          %v2504 = vor.u32 %v2502, %v2503
          %v2505 = vsub.s32 4294967266, %v2500
          %v2506 = vadd.s32 %v2505, 127
          %v2507 = vshll.u32 %v2506, 23
          %v2508 = vor.u32 4788187, %v2507
          %v2509 = vand.u32 2147483647, %v2508
          %v2511 = vcvt.s32.f32 %v2504
          %v2512 = vmul.f32 %v2511, %v2509
          %v2513 = vxor.u32 %v2512, 2147483648
          %v2514 = vsel %vm2393, %v2513, %v2512
          %v2515 = vsub.s32 4, %v2491
          %v2516 = vsel %vm2393, %v2515, %v2491
          %v2517 = vsel %vm2392, %v2235, %v2514
          %v2518 = vsel %vm2392, 0, %v2516
          %v2519 = vmul.f32 %v2517, %v2517
          %v2520 = vmul.f32 %v2519, -0.001358992
          %v2521 = vadd.f32 %v2520, 0.041655596
          %v2522 = vmul.f32 %v2519, %v2521
          %v2523 = vadd.f32 %v2522, -0.4999988
          %v2524 = vmul.f32 %v2519, %v2523
          %v2525 = vadd.f32 1.0, %v2524
          %v2526 = vmul.f32 %v2517, %v2517
          %v2527 = vmul.f32 %v2526, -0.00019511016
          %v2528 = vadd.f32 %v2527, 0.008332121
          %v2529 = vmul.f32 %v2526, %v2528
          %v2530 = vadd.f32 %v2529, -0.16666654
          %v2531 = vmul.f32 %v2526, %v2530
          %v2532 = vadd.f32 %v2531, 1.0
          %v2533 = vmul.f32 %v2532, %v2517
          %vm2534 = vweird.f32 %v2235
          %v2535 = vadd.s32 %v2518, 3
          %v2536 = vand.u32 %v2535, 3
          %vm2537 = vcmp.lt.s32.totalorder %v2536, 2
          %vm2538 = vcmp.eq.s32.totalorder %v2536, 0
          %v2539 = vxor.u32 %v2533, 2147483648
          %v2540 = vsel %vm2538, %v2525, %v2539
          %vm2541 = vcmp.eq.s32.totalorder %v2536, 2
          %v2542 = vxor.u32 %v2525, 2147483648
          %v2543 = vsel %vm2541, %v2542, %v2533
          %v2544 = vsel %vm2537, %v2540, %v2543
          %v2545 = vsel %vm2534, nan, %v2544
          %v2546 = vmul.f32 %v2232, %v2390
          %v2547 = vmul.f32 %v2233, %v2545
          %vm2548 = vcmp.le.s32.totalorder %v1874, %v1871
          %vm2549 = vcmp.le.s32.totalorder %v1874, %v1872
          %v2550 = vsel %vm2548, %v2546, 0.0
          %v2551 = vsel %vm2549, %v2547, 0.0
          %vm2552 = vcmp.eq.s32.totalorder %v1871, %v1874
          %vm2553 = vcmp.eq.s32.totalorder %v1872, %v1874
          %v2554 = vsel %vm2552, 1, 0
          %v2555 = vsel %vm2553, 1, 0
          %v2556 = vcvt.s32.f32 %v2554
          %v2557 = vcvt.s32.f32 %v2555
          %v2558 = vsub.f32 %v2550, %v2556
          %v2559 = vsub.f32 %v2551, %v2557
          %vm2560 = vcmask 130048
          %2561 = vst.msk [vmem:[%s281] sm:$0xff] %vm2560, %v2558
          %2562 = vst.msk [vmem:[%s281 + $0x8] sm:$0xff] %vm2560, %v2559
        $region84: #{tpu_custom_call.1} parent=39 // pred_fallthru
          _
        %s2563 = sand.u32 %s150, 1
        %s2564 = scalar_lea.sflag [#allocation3], %s2563
        %s2565 = sand.u32 %s150, 1
        %s2566 = smul.addr %s2565, 16
        %s2567 = scalar_lea.vmem [#allocation12], %s2566
        // Predicated region
        $region85: #{tpu_custom_call.1} parent=39 // pred_check
          %p2568 = pneg %p160
        $region86: #{tpu_custom_call.1} parent=39 // pred_check_branch
          %2570 = sbr.rel (%p2568) target = $region88
        $region87: #{tpu_custom_call.1} parent=39 // pred_region
          %s2571 = smul.u32 2, %s28
          %2573 = vsyncadd %s2564, 0
          %s2574 = smul.addr %s27, 2
          %s2575 = sadd.s32 %s2571, %s2574
          %s2576 = smul.addr %s2575, 8
          %s2577 = scalar_lea.hbm %s5, %s2576
          %s2578 = sshll.u32 %s2567, 4
          %s2579 = int_to_ptr.vmem [resolvable:$true] %s2578
          %s2580 = sshll.u32 %s2577, 4
          %s2581 = int_to_ptr.hbm [resolvable:$true] %s2580
          %2586 = dma.vmem_to_hbm [thread:$0]  %s2579, 256, %s2581, %s2564, 128, 128, 8
        $region88: #{tpu_custom_call.1} parent=39 // pred_fallthru
          _
      $region40: #{tpu_custom_call.1} parent=5 // pred_fallthru
        _
      %p2587 = scmp.le.s32.totalorder 2, %s18
      // Predicated region
      $region89: #{tpu_custom_call.1} parent=5 // pred_check
        %p2588 = pneg %p2587
      $region90: #{tpu_custom_call.1} parent=5 // pred_check_branch
        %2590 = sbr.rel (%p2588) target = $region92
      $region91: #{tpu_custom_call.1} parent=5 // pred_region
        %s2591 = ssub.s32 %s18, 2
        // Predicated region
        $region93: #{tpu_custom_call.1} parent=91 // pred_check
          %p2592 = pneg %p166
        $region94: #{tpu_custom_call.1} parent=91 // pred_check_branch
          %2594 = sbr.rel (%p2592) target = $region96
        $region95: #{tpu_custom_call.1} parent=91 // pred_region
          %s2595 = sand.u32 %s151, 1
          %s2596 = scalar_lea.sflag [#allocation3], %s2595
          %s2597 = sand.u32 %s151, 1
          %s2598 = smul.addr %s2597, 16
          %s2599 = scalar_lea.vmem [#allocation12], %s2598
          %2601 = dma.done %s2596, 256
        $region96: #{tpu_custom_call.1} parent=91 // pred_fallthru
          _
      $region92: #{tpu_custom_call.1} parent=5 // pred_fallthru
        _
    $region6: #{tpu_custom_call.1} parent=1 // loop_footer
      %s22 = sadd.s32 1, %s18
    $region7: #{tpu_custom_call.1} parent=1 // loop_footer_branch
      %17 = sbr.rel target = $region3
    $region8: #{tpu_custom_call.1} parent=1 // loop_exit
      _
    %2602 = vsyncpa [#allocation3], 1
    %s2603 = scalar_lea.sflag [#allocation3], 1
    %2604 = vsyncpa %s2603, 1
    %2605 = vsyncpa [#allocation4], 1
    %s2606 = scalar_lea.sflag [#allocation4], 1
    %2607 = vsyncpa %s2606, 1
    %2608 = vsyncpa [#allocation7], 1
    %2609 = vsyncpa [#allocation5], 1
    %s2610 = scalar_lea.sflag [#allocation5], 1
    %2611 = vsyncpa %s2610, 1
    %2612 = vsyncpa [#allocation10], 1

</llo_original>
